<compile_context>
chip_gen: v7x
topology: tpu7x:2x2x1
jax: 0.10.0
libtpu: 0.0.40
codegen_flags: <defaults>
</compile_context>

<pallas_src>
import math

import jax
import jax.numpy as jnp
from jax import lax
from jax.experimental import pallas as pl
from jax.experimental.pallas import tpu as pltpu

NUM_HEADS = 4  # config.num_attention_heads


def bert_attention_kernel(x_ref, mask_ref,
                          wq_ref, bq_ref, wk_ref, bk_ref, wv_ref, bv_ref,
                          wo_ref, bo_ref, gamma_ref, beta_ref,
                          out_ref, acc_ref):
    """Grid = (batch_blocks, num_heads); heads are the innermost reduction axis.

    x_ref    : (Bt, S, H) f32  hidden_states block (VMEM-resident across heads)
    mask_ref : (Bt, 1, S) f32  additive mask, broadcast over query rows
    wq/wk/wv : (1, H, hd) bf16 this head's projection (score scale folded in wq)
    bq/bk/bv : (1, 1, hd) f32
    wo_ref   : (1, hd, H) bf16 this head's rows of the output projection
    bo/gamma/beta : (1, H) f32
    out_ref  : (Bt, S, H) f32  written on the last head step only (P3 pattern)
    acc_ref  : (Bt*S, H) f32   VMEM accumulator for the projected context
    """
    h = pl.program_id(1)
    nh = pl.num_programs(1)
    Bt, S, H = x_ref.shape
    N = Bt * S
    hd = wq_ref.shape[-1]

    @pl.when(h == 0)
    def _init():
        acc_ref[...] = jnp.zeros_like(acc_ref)

    x = x_ref[...]                                    # (Bt, S, H) f32
    xb = x.reshape(N, H).astype(jnp.bfloat16)         # flatten batch*seq rows

    # Per-head Q/K/V projections: full H-depth contractions, bf16 in / f32 acc.
    # Head slicing is done by the weight BlockSpecs (free), not in-kernel lanes.
    q = jnp.dot(xb, wq_ref[0], preferred_element_type=jnp.float32) + bq_ref[0]
    k = jnp.dot(xb, wk_ref[0], preferred_element_type=jnp.float32) + bk_ref[0]
    v = jnp.dot(xb, wv_ref[0], preferred_element_type=jnp.float32) + bv_ref[0]

    qb = q.reshape(Bt, S, hd).astype(jnp.bfloat16)
    kb = k.reshape(Bt, S, hd).astype(jnp.bfloat16)
    vb = v.reshape(Bt, S, hd).astype(jnp.bfloat16)

    # QK^T batched over the Bt batch elements in this block; the 1/sqrt(hd)
    # scale is already folded into wq/bq.
    scores = jnp.einsum("bqd,bkd->bqk", qb, kb,
                        preferred_element_type=jnp.float32)            # (Bt,S,S)
    scores = scores + mask_ref[...]                                    # (Bt,1,S)

    # Softmax in f32 (attention-probs dropout is identity in eval mode).
    m = jnp.max(scores, axis=-1, keepdims=True)
    e = jnp.exp(scores - m)
    denom = jnp.sum(e, axis=-1, keepdims=True)
    probs = e * pl.reciprocal(denom, approx=True)                      # EUP recip

    ctx = jnp.einsum("bqk,bkd->bqd", probs.astype(jnp.bfloat16), vb,
                     preferred_element_type=jnp.float32)               # (Bt,S,hd)

    # Output projection for this head accumulated into the VMEM f32 scratch:
    # equivalent to concat-over-heads @ Wo with no concat materialized.
    # TODO(synk): on 256-deep MXUs (v6e/v7x) a single full-depth (N,H)@(H,H)
    # projection after all heads would use ~4x fewer MXU passes, but requires
    # materializing the head-concat; this head-on-grid layout avoids that.
    acc_ref[...] += jnp.dot(ctx.reshape(N, hd).astype(jnp.bfloat16), wo_ref[0],
                            preferred_element_type=jnp.float32)

    @pl.when(h == nh - 1)
    def _finalize():
        # BertSelfOutput: dense bias + residual + LayerNorm(eps=1e-12), all f32.
        dense = acc_ref[...] + bo_ref[...]
        resid = dense + x.reshape(N, H)
        mean = jnp.mean(resid, axis=-1, keepdims=True)
        var = jnp.mean((resid - mean) ** 2, axis=-1, keepdims=True)
        normed = (resid - mean) * lax.rsqrt(var + 1e-12)
        out = normed * gamma_ref[...] + beta_ref[...]
        # TODO(synk): H < 128 (toy config) forces masked partial stores; real
        # BERT hidden sizes (H >= 768) are already lane-dense.
        out_ref[...] = out.reshape(Bt, S, H)


def prepare_params(params, num_heads=NUM_HEADS):
    """One-time transform of (in,out)-layout Linear params into kernel layout.

    - Folds the 1/sqrt(head_dim) score scale into Wq / bq.
    - Rearranges Q/K/V/O weights head-major so the head grid axis can slice
      them at the BlockSpec level (no in-kernel lane slicing).
    - Matmul weights stored as bf16 (kernel accumulates in f32); biases and
      LayerNorm params stay f32.
    """
    H = params["wq"].shape[0]
    hd = H // num_heads
    scale = 1.0 / math.sqrt(hd)

    def head_major_w(w):   # (H, H) (in,out) -> (nh, H, hd); [h] = w[:, h*hd:(h+1)*hd]
        return jnp.transpose(w.reshape(H, num_heads, hd), (1, 0, 2))

    def head_major_b(b):   # (1, H) -> (nh, 1, hd)
        return b.reshape(num_heads, hd)[:, None, :]

    return dict(
        wq=head_major_w(params["wq"] * scale).astype(jnp.bfloat16),
        bq=head_major_b(params["bq"] * scale).astype(jnp.float32),
        wk=head_major_w(params["wk"]).astype(jnp.bfloat16),
        bk=head_major_b(params["bk"]).astype(jnp.float32),
        wv=head_major_w(params["wv"]).astype(jnp.bfloat16),
        bv=head_major_b(params["bv"]).astype(jnp.float32),
        # Wo rows split head-major: wo[h] = Wo[h*hd:(h+1)*hd, :]
        wo=params["wo"].reshape(num_heads, hd, H).astype(jnp.bfloat16),
        bo=params["bo"].astype(jnp.float32),
        gamma=params["gamma"].astype(jnp.float32),
        beta=params["beta"].astype(jnp.float32),
    )


def _pick_block_b(B, S):
    """Batch tile so each grid step processes >= ~128 rows (fills MXU rows),
    while dividing B evenly."""
    bt = min(B, max(1, pl.cdiv(128, S)))
    while B % bt:
        bt -= 1
    return bt


def bert_attention(x, attention_mask, prepared, num_heads=NUM_HEADS):
    """x: (B, S, H) f32.  attention_mask: additive mask over key positions,
    shape (B, 1, S), (B, S) or HF-extended (B, 1, 1, S); or None."""
    B, S, H = x.shape
    if attention_mask is None:
        mask = jnp.zeros((B, 1, S), jnp.float32)
    else:
        m = jnp.asarray(attention_mask, jnp.float32)
        if m.ndim == 4:        # Hugging Face extended mask (B, 1, 1, S)
            m = m.reshape(B, -1, S)[:, :1, :]
        elif m.ndim == 2:      # (B, S)
            m = m[:, None, :]
        mask = jnp.broadcast_to(m, (B, 1, S))

    Bt = _pick_block_b(B, S)
    hd = H // num_heads

    def const(shape):
        # Constant index_map -> block stays VMEM-resident across the whole grid.
        return pl.BlockSpec(shape, lambda b, h: (0,) * len(shape))

    def per_head(shape):
        # Head-sliced weight block selected by the head grid axis (free slicing).
        return pl.BlockSpec(shape, lambda b, h: (h,) + (0,) * (len(shape) - 1))

    def per_batch(shape):
        # Batch-block index only -> resident (not re-DMA'd) across the head axis.
        return pl.BlockSpec(shape, lambda b, h: (b, 0, 0))

    return pl.pallas_call(
        bert_attention_kernel,
        out_shape=jax.ShapeDtypeStruct((B, S, H), jnp.float32),
        grid_spec=pltpu.PrefetchScalarGridSpec(
            num_scalar_prefetch=0,
            grid=(B // Bt, num_heads),          # heads innermost (reduction axis)
            in_specs=[
                per_batch((Bt, S, H)),          # hidden_states
                per_batch((Bt, 1, S)),          # additive mask
                per_head((1, H, hd)),           # Wq_h (scale folded)
                per_head((1, 1, hd)),           # bq_h
                per_head((1, H, hd)),           # Wk_h
                per_head((1, 1, hd)),           # bk_h
                per_head((1, H, hd)),           # Wv_h
                per_head((1, 1, hd)),           # bv_h
                per_head((1, hd, H)),           # Wo_h
                const((1, H)),                  # bo
                const((1, H)),                  # LN gamma
                const((1, H)),                  # LN beta
            ],
            out_specs=pl.BlockSpec((Bt, S, H), lambda b, h: (b, 0, 0)),
            scratch_shapes=[pltpu.VMEM((Bt * S, H), jnp.float32)],
        ),
        compiler_params=pltpu.CompilerParams(
            dimension_semantics=("parallel", "arbitrary")),
    )(x, mask,
      prepared["wq"], prepared["bq"], prepared["wk"], prepared["bk"],
      prepared["wv"], prepared["bv"], prepared["wo"],
      prepared["bo"], prepared["gamma"], prepared["beta"])


def reference(x, mask, params, num_heads=NUM_HEADS):
    """Plain-JAX f32 reference of BertAttention.forward (eval mode)."""
    B, S, H = x.shape
    hd = H // num_heads
    q = x @ params["wq"] + params["bq"][0]
    k = x @ params["wk"] + params["bk"][0]
    v = x @ params["wv"] + params["bv"][0]

    def split(t):  # (B,S,H) -> (B,nh,S,hd)
        return t.reshape(B, S, num_heads, hd).transpose(0, 2, 1, 3)

    q, k, v = split(q), split(k), split(v)
    scores = jnp.einsum("bhqd,bhkd->bhqk", q, k) / math.sqrt(hd)
    if mask is not None:
        scores = scores + mask[:, None]            # (B,1,S) -> (B,1,1,S)
    probs = jax.nn.softmax(scores, axis=-1)
    ctx = jnp.einsum("bhqk,bhkd->bhqd", probs, v).transpose(0, 2, 1, 3).reshape(B, S, H)
    dense = ctx @ params["wo"] + params["bo"][0]
    resid = dense + x
    mean = resid.mean(-1, keepdims=True)
    var = ((resid - mean) ** 2).mean(-1, keepdims=True)
    return (resid - mean) / jnp.sqrt(var + 1e-12) * params["gamma"][0] + params["beta"][0]


if __name__ == "__main__":
    B, S, H = 2, 8, 32   # batch=2, seq=8, hidden=32, 4 heads of size 8
    key = jax.random.PRNGKey(0)
    keys = jax.random.split(key, 12)

    # Deterministic synthetic parameters. nn.Linear weights (out,in) are
    # generated then transposed to (in,out) for the kernel.
    def lin(kw, kb):
        w = jax.random.normal(kw, (H, H), jnp.float32) * 0.02
        b = jax.random.normal(kb, (1, H), jnp.float32) * 0.02
        return w.T, b

    wq, bq = lin(keys[0], keys[1])
    wk, bk = lin(keys[2], keys[3])
    wv, bv = lin(keys[4], keys[5])
    wo, bo = lin(keys[6], keys[7])
    params = dict(
        wq=wq, bq=bq, wk=wk, bk=bk, wv=wv, bv=bv, wo=wo, bo=bo,
        gamma=jnp.ones((1, H), jnp.float32),
        beta=jnp.zeros((1, H), jnp.float32),
    )
    prepared = prepare_params(params)

    x = jax.random.normal(keys[8], (B, S, H), jnp.float32)
    # BERT-style additive mask: 0 for visible, -10000 for masked key positions.
    keep = (jax.random.uniform(keys[9], (B, 1, S)) > 0.2).astype(jnp.float32)
    attention_mask = (1.0 - keep) * -10000.0          # (B, 1, S)

    out = bert_attention(x, attention_mask, prepared)
    out = jax.block_until_ready(out)

    ref = reference(x, attention_mask, params)
    # Kernel uses bf16 MXU inputs (f32 accumulation) + approx reciprocal vs the
    # f32 reference, so tolerance is slightly looser than pure-f32.
    assert jnp.allclose(out, ref, atol=2e-3, rtol=2e-3), "mismatch vs JAX reference"
    print("KERNEL_OK")
</pallas_src>

<mosaic_0001>
module attributes {stable_mosaic.version = 11 : i64} {
  func.func @bert_attention_kernel(%arg0: i32, %arg1: i32, %arg2: memref<2x8x32xf32, #tpu.memory_space<vmem>>, %arg3: memref<2x1x8xf32, #tpu.memory_space<vmem>>, %arg4: memref<1x32x8xbf16, #tpu.memory_space<vmem>>, %arg5: memref<1x1x8xf32, #tpu.memory_space<vmem>>, %arg6: memref<1x32x8xbf16, #tpu.memory_space<vmem>>, %arg7: memref<1x1x8xf32, #tpu.memory_space<vmem>>, %arg8: memref<1x32x8xbf16, #tpu.memory_space<vmem>>, %arg9: memref<1x1x8xf32, #tpu.memory_space<vmem>>, %arg10: memref<1x8x32xbf16, #tpu.memory_space<vmem>>, %arg11: memref<1x32xf32, #tpu.memory_space<vmem>>, %arg12: memref<1x32xf32, #tpu.memory_space<vmem>>, %arg13: memref<1x32xf32, #tpu.memory_space<vmem>>, %arg14: memref<2x8x32xf32, #tpu.memory_space<vmem>>, %arg15: memref<16x32xf32, #tpu.memory_space<vmem>>) attributes {dimension_semantics = [#tpu.dimension_semantics<parallel>, #tpu.dimension_semantics<arbitrary>], iteration_bounds = array<i64: 1, 4>, scalar_prefetch = 0 : i64, scratch_operands = 1 : i64, tpu.core_type = #tpu.core_type<tc>, window_params = [{transform_indices = @transform_0, window_bounds = array<i64: 2, 8, 32>}, {transform_indices = @transform_1, window_bounds = array<i64: 2, 1, 8>}, {transform_indices = @transform_2, window_bounds = array<i64: 1, 32, 8>}, {transform_indices = @transform_3, window_bounds = array<i64: 1, 1, 8>}, {transform_indices = @transform_4, window_bounds = array<i64: 1, 32, 8>}, {transform_indices = @transform_5, window_bounds = array<i64: 1, 1, 8>}, {transform_indices = @transform_6, window_bounds = array<i64: 1, 32, 8>}, {transform_indices = @transform_7, window_bounds = array<i64: 1, 1, 8>}, {transform_indices = @transform_8, window_bounds = array<i64: 1, 8, 32>}, {pipeline_mode = #tpu.pipeline_mode<synchronous>, transform_indices = @transform_9, window_bounds = array<i64: 1, 32>}, {pipeline_mode = #tpu.pipeline_mode<synchronous>, transform_indices = @transform_10, window_bounds = array<i64: 1, 32>}, {pipeline_mode = #tpu.pipeline_mode<synchronous>, transform_indices = @transform_11, window_bounds = array<i64: 1, 32>}, {transform_indices = @transform_12, window_bounds = array<i64: 2, 8, 32>}]} {
    %c0_i32 = arith.constant 0 : i32
    %0 = arith.cmpi eq, %arg1, %c0_i32 : i32
    %1 = arith.extui %0 : i1 to i32
    %c0_i32_0 = arith.constant 0 : i32
    %2 = arith.cmpi ne, %1, %c0_i32_0 : i32
    scf.if %2 {
      %cst_39 = arith.constant 0.000000e+00 : f32
      %60 = vector.broadcast %cst_39 : f32 to vector<16x32xf32>
      %c0_40 = arith.constant 0 : index
      %c0_41 = arith.constant 0 : index
      %61 = vector.load %arg15[%c0_40, %c0_41] : memref<16x32xf32, #tpu.memory_space<vmem>>, vector<16x32xf32>
      tpu.vector_store %arg15[%c0_40, %c0_41], %60 {strides = array<i32>} : memref<16x32xf32, #tpu.memory_space<vmem>>, vector<16x32xf32>,
    } else {
    }
    %c0 = arith.constant 0 : index
    %c0_1 = arith.constant 0 : index
    %c0_2 = arith.constant 0 : index
    %3 = vector.load %arg2[%c0, %c0_1, %c0_2] : memref<2x8x32xf32, #tpu.memory_space<vmem>>, vector<2x8x32xf32>
    %4 = vector.shape_cast %3 : vector<2x8x32xf32> to vector<16x32xf32>
    %5 = arith.truncf %4 : vector<16x32xf32> to vector<16x32xbf16>
    %c0_3 = arith.constant 0 : index
    %c0_4 = arith.constant 0 : index
    %c0_5 = arith.constant 0 : index
    %6 = vector.load %arg4[%c0_3, %c0_4, %c0_5] : memref<1x32x8xbf16, #tpu.memory_space<vmem>>, vector<1x32x8xbf16>
    %7 = vector.shape_cast %6 : vector<1x32x8xbf16> to vector<32x8xbf16>
    %cst = arith.constant dense<0.000000e+00> : vector<16x8xf32>
    %8 = tpu.matmul %5, %7, %cst {dimension_numbers = #tpu.dot_dimension_numbers<[1], [0], [0], [1], [0, 0, 1, 1], [], []>} : vector<16x32xbf16>, vector<32x8xbf16>, vector<16x8xf32> -> vector<16x8xf32>
    %c0_6 = arith.constant 0 : index
    %c0_7 = arith.constant 0 : index
    %c0_8 = arith.constant 0 : index
    %9 = vector.load %arg5[%c0_6, %c0_7, %c0_8] : memref<1x1x8xf32, #tpu.memory_space<vmem>>, vector<1x1x8xf32>
    %10 = vector.shape_cast %9 : vector<1x1x8xf32> to vector<1x8xf32>
    %11 = vector.broadcast %10 : vector<1x8xf32> to vector<16x8xf32>
    %12 = arith.addf %8, %11 : vector<16x8xf32>
    %c0_9 = arith.constant 0 : index
    %c0_10 = arith.constant 0 : index
    %c0_11 = arith.constant 0 : index
    %13 = vector.load %arg6[%c0_9, %c0_10, %c0_11] : memref<1x32x8xbf16, #tpu.memory_space<vmem>>, vector<1x32x8xbf16>
    %14 = vector.shape_cast %13 : vector<1x32x8xbf16> to vector<32x8xbf16>
    %cst_12 = arith.constant dense<0.000000e+00> : vector<16x8xf32>
    %15 = tpu.matmul %5, %14, %cst_12 {dimension_numbers = #tpu.dot_dimension_numbers<[1], [0], [0], [1], [0, 0, 1, 1], [], []>} : vector<16x32xbf16>, vector<32x8xbf16>, vector<16x8xf32> -> vector<16x8xf32>
    %c0_13 = arith.constant 0 : index
    %c0_14 = arith.constant 0 : index
    %c0_15 = arith.constant 0 : index
    %16 = vector.load %arg7[%c0_13, %c0_14, %c0_15] : memref<1x1x8xf32, #tpu.memory_space<vmem>>, vector<1x1x8xf32>
    %17 = vector.shape_cast %16 : vector<1x1x8xf32> to vector<1x8xf32>
    %18 = vector.broadcast %17 : vector<1x8xf32> to vector<16x8xf32>
    %19 = arith.addf %15, %18 : vector<16x8xf32>
    %c0_16 = arith.constant 0 : index
    %c0_17 = arith.constant 0 : index
    %c0_18 = arith.constant 0 : index
    %20 = vector.load %arg8[%c0_16, %c0_17, %c0_18] : memref<1x32x8xbf16, #tpu.memory_space<vmem>>, vector<1x32x8xbf16>
    %21 = vector.shape_cast %20 : vector<1x32x8xbf16> to vector<32x8xbf16>
    %cst_19 = arith.constant dense<0.000000e+00> : vector<16x8xf32>
    %22 = tpu.matmul %5, %21, %cst_19 {dimension_numbers = #tpu.dot_dimension_numbers<[1], [0], [0], [1], [0, 0, 1, 1], [], []>} : vector<16x32xbf16>, vector<32x8xbf16>, vector<16x8xf32> -> vector<16x8xf32>
    %c0_20 = arith.constant 0 : index
    %c0_21 = arith.constant 0 : index
    %c0_22 = arith.constant 0 : index
    %23 = vector.load %arg9[%c0_20, %c0_21, %c0_22] : memref<1x1x8xf32, #tpu.memory_space<vmem>>, vector<1x1x8xf32>
    %24 = vector.shape_cast %23 : vector<1x1x8xf32> to vector<1x8xf32>
    %25 = vector.broadcast %24 : vector<1x8xf32> to vector<16x8xf32>
    %26 = arith.addf %22, %25 : vector<16x8xf32>
    %27 = vector.shape_cast %12 : vector<16x8xf32> to vector<2x8x8xf32>
    %28 = arith.truncf %27 : vector<2x8x8xf32> to vector<2x8x8xbf16>
    %29 = vector.shape_cast %19 : vector<16x8xf32> to vector<2x8x8xf32>
    %30 = arith.truncf %29 : vector<2x8x8xf32> to vector<2x8x8xbf16>
    %31 = vector.shape_cast %26 : vector<16x8xf32> to vector<2x8x8xf32>
    %32 = arith.truncf %31 : vector<2x8x8xf32> to vector<2x8x8xbf16>
    "tpu.trace_start"() <{level = 10 : i32, message = "bqd,bkd->bqk"}> : () -> ()
    %cst_23 = arith.constant dense<0.000000e+00> : vector<2x8x8xf32>
    %33 = tpu.matmul %28, %30, %cst_23 {dimension_numbers = #tpu.dot_dimension_numbers<[2], [2], [1], [1], [0, 0, 0, 1, 1, 1], [0], [0]>} : vector<2x8x8xbf16>, vector<2x8x8xbf16>, vector<2x8x8xf32> -> vector<2x8x8xf32>
    "tpu.trace_stop"() : () -> ()
    %c0_24 = arith.constant 0 : index
    %c0_25 = arith.constant 0 : index
    %c0_26 = arith.constant 0 : index
    %34 = vector.load %arg3[%c0_24, %c0_25, %c0_26] : memref<2x1x8xf32, #tpu.memory_space<vmem>>, vector<2x1x8xf32>
    %35 = vector.broadcast %34 : vector<2x1x8xf32> to vector<2x8x8xf32>
    %36 = arith.addf %33, %35 : vector<2x8x8xf32>
    %cst_27 = arith.constant dense<0xFF800000> : vector<2x8xf32>
    %37 = vector.multi_reduction <maximumf>, %36, %cst_27 [2] : vector<2x8x8xf32> to vector<2x8xf32>
    %38 = vector.shape_cast %37 : vector<2x8xf32> to vector<2x8x1xf32>
    %39 = vector.broadcast %38 : vector<2x8x1xf32> to vector<2x8x8xf32>
    %40 = arith.subf %36, %39 : vector<2x8x8xf32>
    %41 = math.exp %40 : vector<2x8x8xf32>
    %cst_28 = arith.constant dense<0.000000e+00> : vector<2x8xf32>
    %42 = vector.multi_reduction <add>, %41, %cst_28 [2] : vector<2x8x8xf32> to vector<2x8xf32>
    %43 = vector.shape_cast %42 : vector<2x8xf32> to vector<2x8x1xf32>
    %44 = tpu.reciprocal %43 {approx = true} : vector<2x8x1xf32> -> vector<2x8x1xf32>
    %45 = vector.broadcast %44 : vector<2x8x1xf32> to vector<2x8x8xf32>
    %46 = arith.mulf %41, %45 : vector<2x8x8xf32>
    %47 = arith.truncf %46 : vector<2x8x8xf32> to vector<2x8x8xbf16>
    "tpu.trace_start"() <{level = 10 : i32, message = "bqk,bkd->bqd"}> : () -> ()
    %cst_29 = arith.constant dense<0.000000e+00> : vector<2x8x8xf32>
    %48 = tpu.matmul %47, %32, %cst_29 {dimension_numbers = #tpu.dot_dimension_numbers<[2], [1], [1], [2], [0, 0, 0, 1, 1, 2], [0], [0]>} : vector<2x8x8xbf16>, vector<2x8x8xbf16>, vector<2x8x8xf32> -> vector<2x8x8xf32>
    "tpu.trace_stop"() : () -> ()
    %c0_30 = arith.constant 0 : index
    %c0_31 = arith.constant 0 : index
    %49 = vector.load %arg15[%c0_30, %c0_31] : memref<16x32xf32, #tpu.memory_space<vmem>>, vector<16x32xf32>
    %50 = vector.shape_cast %48 : vector<2x8x8xf32> to vector<16x8xf32>
    %51 = arith.truncf %50 : vector<16x8xf32> to vector<16x8xbf16>
    %c0_32 = arith.constant 0 : index
    %c0_33 = arith.constant 0 : index
    %c0_34 = arith.constant 0 : index
    %52 = vector.load %arg10[%c0_32, %c0_33, %c0_34] : memref<1x8x32xbf16, #tpu.memory_space<vmem>>, vector<1x8x32xbf16>
    %53 = vector.shape_cast %52 : vector<1x8x32xbf16> to vector<8x32xbf16>
    %cst_35 = arith.constant dense<0.000000e+00> : vector<16x32xf32>
    %54 = tpu.matmul %51, %53, %cst_35 {dimension_numbers = #tpu.dot_dimension_numbers<[1], [0], [0], [1], [0, 0, 1, 1], [], []>} : vector<16x8xbf16>, vector<8x32xbf16>, vector<16x32xf32> -> vector<16x32xf32>
    %55 = arith.addf %49, %54 : vector<16x32xf32>
    %c0_36 = arith.constant 0 : index
    %c0_37 = arith.constant 0 : index
    %56 = vector.load %arg15[%c0_36, %c0_37] : memref<16x32xf32, #tpu.memory_space<vmem>>, vector<16x32xf32>
    tpu.vector_store %arg15[%c0_36, %c0_37], %55 {strides = array<i32>} : memref<16x32xf32, #tpu.memory_space<vmem>>, vector<16x32xf32>,
    %c3_i32 = arith.constant 3 : i32
    %57 = arith.cmpi eq, %arg1, %c3_i32 : i32
    %58 = arith.extui %57 : i1 to i32
    %c0_i32_38 = arith.constant 0 : i32
    %59 = arith.cmpi ne, %58, %c0_i32_38 : i32
    scf.if %59 {
      %c0_39 = arith.constant 0 : index
      %c0_40 = arith.constant 0 : index
      %60 = vector.load %arg15[%c0_39, %c0_40] : memref<16x32xf32, #tpu.memory_space<vmem>>, vector<16x32xf32>
      %c0_41 = arith.constant 0 : index
      %c0_42 = arith.constant 0 : index
      %61 = vector.load %arg11[%c0_41, %c0_42] : memref<1x32xf32, #tpu.memory_space<vmem>>, vector<1x32xf32>
      %62 = vector.broadcast %61 : vector<1x32xf32> to vector<16x32xf32>
      %63 = arith.addf %60, %62 : vector<16x32xf32>
      %64 = vector.shape_cast %3 : vector<2x8x32xf32> to vector<16x32xf32>
      %65 = arith.addf %63, %64 : vector<16x32xf32>
      %cst_43 = arith.constant dense<0.000000e+00> : vector<16xf32>
      %66 = vector.multi_reduction <add>, %65, %cst_43 [1] : vector<16x32xf32> to vector<16xf32>
      %67 = vector.shape_cast %66 : vector<16xf32> to vector<16x1xf32>
      %cst_44 = arith.constant 3.200000e+01 : f32
      %68 = vector.broadcast %cst_44 : f32 to vector<16x1xf32>
      %69 = arith.divf %67, %68 : vector<16x1xf32>
      %70 = vector.broadcast %69 : vector<16x1xf32> to vector<16x32xf32>
      %71 = arith.subf %65, %70 : vector<16x32xf32>
      %72 = arith.mulf %71, %71 : vector<16x32xf32>
      %cst_45 = arith.constant dense<0.000000e+00> : vector<16xf32>
      %73 = vector.multi_reduction <add>, %72, %cst_45 [1] : vector<16x32xf32> to vector<16xf32>
      %74 = vector.shape_cast %73 : vector<16xf32> to vector<16x1xf32>
      %cst_46 = arith.constant 3.200000e+01 : f32
      %75 = vector.broadcast %cst_46 : f32 to vector<16x1xf32>
      %76 = arith.divf %74, %75 : vector<16x1xf32>
      %77 = vector.broadcast %69 : vector<16x1xf32> to vector<16x32xf32>
      %78 = arith.subf %65, %77 : vector<16x32xf32>
      %cst_47 = arith.constant 9.99999996E-13 : f32
      %79 = vector.broadcast %cst_47 : f32 to vector<16x1xf32>
      %80 = arith.addf %76, %79 : vector<16x1xf32>
      %81 = math.rsqrt %80 : vector<16x1xf32>
      %82 = vector.broadcast %81 : vector<16x1xf32> to vector<16x32xf32>
      %83 = arith.mulf %78, %82 : vector<16x32xf32>
      %c0_48 = arith.constant 0 : index
      %c0_49 = arith.constant 0 : index
      %84 = vector.load %arg12[%c0_48, %c0_49] : memref<1x32xf32, #tpu.memory_space<vmem>>, vector<1x32xf32>
      %85 = vector.broadcast %84 : vector<1x32xf32> to vector<16x32xf32>
      %86 = arith.mulf %83, %85 : vector<16x32xf32>
      %c0_50 = arith.constant 0 : index
      %c0_51 = arith.constant 0 : index
      %87 = vector.load %arg13[%c0_50, %c0_51] : memref<1x32xf32, #tpu.memory_space<vmem>>, vector<1x32xf32>
      %88 = vector.broadcast %87 : vector<1x32xf32> to vector<16x32xf32>
      %89 = arith.addf %86, %88 : vector<16x32xf32>
      %90 = vector.shape_cast %89 : vector<16x32xf32> to vector<2x8x32xf32>
      %c0_52 = arith.constant 0 : index
      %c0_53 = arith.constant 0 : index
      %c0_54 = arith.constant 0 : index
      %91 = vector.load %arg14[%c0_52, %c0_53, %c0_54] : memref<2x8x32xf32, #tpu.memory_space<vmem>>, vector<2x8x32xf32>
      tpu.vector_store %arg14[%c0_52, %c0_53, %c0_54], %90 {strides = array<i32>} : memref<2x8x32xf32, #tpu.memory_space<vmem>>, vector<2x8x32xf32>,
    } else {
    }
    return
  }
  func.func @transform_0(%arg0: i32, %arg1: i32) -> (i32, i32, i32) {
    %c0_i32 = arith.constant 0 : i32
    %c0_i32_0 = arith.constant 0 : i32
    %c0_i32_1 = arith.constant 0 : i32
    return %arg0, %c0_i32, %c0_i32_0 : i32, i32, i32
  }
  func.func @transform_1(%arg0: i32, %arg1: i32) -> (i32, i32, i32) {
    %c0_i32 = arith.constant 0 : i32
    %c0_i32_0 = arith.constant 0 : i32
    %c0_i32_1 = arith.constant 0 : i32
    return %arg0, %c0_i32, %c0_i32_0 : i32, i32, i32
  }
  func.func @transform_2(%arg0: i32, %arg1: i32) -> (i32, i32, i32) {
    %c0_i32 = arith.constant 0 : i32
    %c0_i32_0 = arith.constant 0 : i32
    %c0_i32_1 = arith.constant 0 : i32
    return %arg1, %c0_i32, %c0_i32_0 : i32, i32, i32
  }
  func.func @transform_3(%arg0: i32, %arg1: i32) -> (i32, i32, i32) {
    %c0_i32 = arith.constant 0 : i32
    %c0_i32_0 = arith.constant 0 : i32
    %c0_i32_1 = arith.constant 0 : i32
    return %arg1, %c0_i32, %c0_i32_0 : i32, i32, i32
  }
  func.func @transform_4(%arg0: i32, %arg1: i32) -> (i32, i32, i32) {
    %c0_i32 = arith.constant 0 : i32
    %c0_i32_0 = arith.constant 0 : i32
    %c0_i32_1 = arith.constant 0 : i32
    return %arg1, %c0_i32, %c0_i32_0 : i32, i32, i32
  }
  func.func @transform_5(%arg0: i32, %arg1: i32) -> (i32, i32, i32) {
    %c0_i32 = arith.constant 0 : i32
    %c0_i32_0 = arith.constant 0 : i32
    %c0_i32_1 = arith.constant 0 : i32
    return %arg1, %c0_i32, %c0_i32_0 : i32, i32, i32
  }
  func.func @transform_6(%arg0: i32, %arg1: i32) -> (i32, i32, i32) {
    %c0_i32 = arith.constant 0 : i32
    %c0_i32_0 = arith.constant 0 : i32
    %c0_i32_1 = arith.constant 0 : i32
    return %arg1, %c0_i32, %c0_i32_0 : i32, i32, i32
  }
  func.func @transform_7(%arg0: i32, %arg1: i32) -> (i32, i32, i32) {
    %c0_i32 = arith.constant 0 : i32
    %c0_i32_0 = arith.constant 0 : i32
    %c0_i32_1 = arith.constant 0 : i32
    return %arg1, %c0_i32, %c0_i32_0 : i32, i32, i32
  }
  func.func @transform_8(%arg0: i32, %arg1: i32) -> (i32, i32, i32) {
    %c0_i32 = arith.constant 0 : i32
    %c0_i32_0 = arith.constant 0 : i32
    %c0_i32_1 = arith.constant 0 : i32
    return %arg1, %c0_i32, %c0_i32_0 : i32, i32, i32
  }
  func.func @transform_9(%arg0: i32, %arg1: i32) -> (i32, i32) {
    %c0_i32 = arith.constant 0 : i32
    %c0_i32_0 = arith.constant 0 : i32
    %c0_i32_1 = arith.constant 0 : i32
    return %c0_i32, %c0_i32_0 : i32, i32
  }
  func.func @transform_10(%arg0: i32, %arg1: i32) -> (i32, i32) {
    %c0_i32 = arith.constant 0 : i32
    %c0_i32_0 = arith.constant 0 : i32
    %c0_i32_1 = arith.constant 0 : i32
    return %c0_i32, %c0_i32_0 : i32, i32
  }
  func.func @transform_11(%arg0: i32, %arg1: i32) -> (i32, i32) {
    %c0_i32 = arith.constant 0 : i32
    %c0_i32_0 = arith.constant 0 : i32
    %c0_i32_1 = arith.constant 0 : i32
    return %c0_i32, %c0_i32_0 : i32, i32
  }
  func.func @transform_12(%arg0: i32, %arg1: i32) -> (i32, i32, i32) {
    %c0_i32 = arith.constant 0 : i32
    %c0_i32_0 = arith.constant 0 : i32
    %c0_i32_1 = arith.constant 0 : i32
    return %arg0, %c0_i32, %c0_i32_0 : i32, i32, i32
  }
}

</mosaic_0001>

<llo_original>
// kernel: tpu_custom_call.1
$region0: #{tpu_custom_call.1}
  #allocation0 [shape = 'u32[]', space=smem, size = 0x4, offset = 0x4, fixed_abs, tag = 'smem constant byte address 0x4 - core index']
  #allocation1 [shape = 'u32[144,128]{1,0:T(1,128)}', space=vmem, size = 0x12000, scoped, tag = 'internal scratch']
  #allocation2 [shape = 'f32[16,32]{1,0:T(8,128)}', space=vmem, size = 0x2000, scoped, tag = 'scratch operand']
  %s0 = inlined_call_operand.vmem [shape: f32[2,8,32], index: 0, kind: input, shape index: {}]
  %s1 = inlined_call_operand.vmem [shape: f32[2,1,8], index: 1, kind: input, shape index: {}]
  %s2 = inlined_call_operand.vmem [shape: bf16[4,32,8], index: 2, kind: input, shape index: {}]
  %s3 = inlined_call_operand.vmem [shape: f32[4,1,8], index: 3, kind: input, shape index: {}]
  %s4 = inlined_call_operand.vmem [shape: bf16[4,32,8], index: 4, kind: input, shape index: {}]
  %s5 = inlined_call_operand.vmem [shape: f32[4,1,8], index: 5, kind: input, shape index: {}]
  %s6 = inlined_call_operand.vmem [shape: bf16[4,32,8], index: 6, kind: input, shape index: {}]
  %s7 = inlined_call_operand.vmem [shape: f32[4,1,8], index: 7, kind: input, shape index: {}]
  %s8 = inlined_call_operand.vmem [shape: bf16[4,8,32], index: 8, kind: input, shape index: {}]
  %s9 = inlined_call_operand.vmem [shape: f32[1,32], index: 9, kind: input, shape index: {}]
  %s10 = inlined_call_operand.vmem [shape: f32[1,32], index: 10, kind: input, shape index: {}]
  %s11 = inlined_call_operand.vmem [shape: f32[1,32], index: 11, kind: input, shape index: {}]
  %s12 = inlined_call_operand.hbm [shape: f32[2,8,32], index: 12, kind: output, shape index: {}]
  %s13 = sld [smem:[#allocation0]]
  $region89: #{tpu_custom_call.1} parent=0
    _
  %s15 = ssub.s32 1, %s13
  %s16 = scalar_select 0, %s15, %s13
  $region1: #{tpu_custom_call.1} parent=0
    #allocation3 [shape = 'u8[8192]{0}', space=vmem, size = 0x2000, scoped, tag = 'output window, operand 0, single buffered']
    #allocation4 [shape = 's32[2]{0}', space=sflag, size = 0x8, scoped, tag = 'scoped memory for tpu_custom_call.1']
    %17 = vsyncpa [#allocation4], 0
    loop: start=0, step=1, limit=6
    $region2: #{tpu_custom_call.1} parent=1 // loop_pre_header
      _
    $region3: #{tpu_custom_call.1} parent=1 // loop_header
      %s19 = sphi 0, %s23
      %p20 = scmp.ge.s32.totalorder %s19, 6
      %s26 = sphi 0, %s38
      %s27 = sphi 0, %s34
      %s28 = sphi 0, %s26
      %s29 = sphi 0, %s27
      %s30 = sphi 0, %s28
      %s31 = sphi 0, %s29
      %s41 = sphi 0, %s43
      %s44 = sphi 0, %s41
      %s45 = sphi 0, %s44
      %s61 = sphi 0, %s45
      %s67 = sphi 0, %s69
      %s70 = sphi 0, %s67
      %s71 = sphi 0, %s70
      %s87 = sphi 0, %s71
      %s93 = sphi 0, %s95
      %s96 = sphi 0, %s93
      %s97 = sphi 0, %s96
      %s113 = sphi 0, %s97
      %s119 = sphi 0, %s121
      %s122 = sphi 0, %s119
      %s123 = sphi 0, %s122
      %s139 = sphi 0, %s123
      %s145 = sphi 0, %s147
      %s148 = sphi 0, %s145
      %s149 = sphi 0, %s148
      %s165 = sphi 0, %s149
      %s171 = sphi 0, %s173
      %s174 = sphi 0, %s171
      %s175 = sphi 0, %s174
      %s191 = sphi 0, %s175
      %s197 = sphi 0, %s199
      %s200 = sphi 0, %s197
      %s201 = sphi 0, %s200
      %s217 = sphi 0, %s201
      %s223 = sphi 0, %s225
      %s226 = sphi 0, %s223
      %s227 = sphi 0, %s226
      %s243 = sphi 0, %s227
      %s249 = sphi 0, %s251
      %s252 = sphi 0, %s249
      %s253 = sphi 0, %s252
      %s269 = sphi 0, %s253
      %s273 = sphi 0, %s273
      %s275 = sphi 0, %s273
      %s276 = sphi 0, %s275
      %s290 = sphi 0, %s276
      %s294 = sphi 0, %s294
      %s296 = sphi 0, %s294
      %s297 = sphi 0, %s296
      %s311 = sphi 0, %s297
      %s315 = sphi 0, %s315
      %s317 = sphi 0, %s315
      %s318 = sphi 0, %s317
      %s332 = sphi 0, %s318
      %s338 = sphi 0, %s340
      %s341 = sphi 0, %s338
      %s342 = sphi 0, %s341
      %s358 = sphi 0, %s342
    $region4: #{tpu_custom_call.1} parent=1 // loop_header_branch
      %22 = sbr.rel (%p20) target = $region8
    $region5: #{tpu_custom_call.1} parent=1 // loop_body
      %s24 = ssub.s32 %s19, 1
      %s25 = ssub.s32 %s19, 2
      %s32 = sadd.s32 1, %s27
      %p33 = scmp.ge.s32.totalorder %s32, 4
      %s34 = scalar_select %p33, 0, %s32
      %s35 = sadd.s32 1, %s26
      %s36 = scalar_select %p33, %s35, %s26
      %p37 = scmp.ge.s32.totalorder %s36, 1
      %s38 = scalar_select %p37, 0, %s36
      %s39 = ssub.s32 %s26, %s38
      %p40 = scmp.eq.s32.totalorder %s39, 0
      %s42 = sadd.s32 %s41, 1
      %s43 = scalar_select %p40, %s41, %s42
      %p46 = pneg %p40
      %p47 = scmp.eq.s32.totalorder %s19, 3
      %p48 = por %p46, %p47
      %p49 = scmp.ne.s32.totalorder %s41, %s44
      %p50 = scmp.eq.s32.totalorder %s19, 0
      %p51 = por %p49, %p50
      %p52 = scmp.ne.s32.totalorder %s41, %s44
      %p53 = scmp.eq.s32.totalorder %s24, 3
      %p54 = por %p52, %p53
      %p55 = scmp.ne.s32.totalorder %s44, %s45
      %p56 = scmp.eq.s32.totalorder %s24, 0
      %p57 = por %p55, %p56
      %p58 = scmp.ne.s32.totalorder %s44, %s45
      %p59 = scmp.eq.s32.totalorder %s25, 3
      %p60 = por %p58, %p59
      %p62 = scmp.ne.s32.totalorder %s45, %s61
      %p63 = scmp.eq.s32.totalorder %s25, 0
      %p64 = por %p62, %p63
      %s65 = ssub.s32 %s26, %s38
      %p66 = scmp.eq.s32.totalorder %s65, 0
      %s68 = sadd.s32 %s67, 1
      %s69 = scalar_select %p66, %s67, %s68
      %p72 = pneg %p66
      %p73 = scmp.eq.s32.totalorder %s19, 3
      %p74 = por %p72, %p73
      %p75 = scmp.ne.s32.totalorder %s67, %s70
      %p76 = scmp.eq.s32.totalorder %s19, 0
      %p77 = por %p75, %p76
      %p78 = scmp.ne.s32.totalorder %s67, %s70
      %p79 = scmp.eq.s32.totalorder %s24, 3
      %p80 = por %p78, %p79
      %p81 = scmp.ne.s32.totalorder %s70, %s71
      %p82 = scmp.eq.s32.totalorder %s24, 0
      %p83 = por %p81, %p82
      %p84 = scmp.ne.s32.totalorder %s70, %s71
      %p85 = scmp.eq.s32.totalorder %s25, 3
      %p86 = por %p84, %p85
      %p88 = scmp.ne.s32.totalorder %s71, %s87
      %p89 = scmp.eq.s32.totalorder %s25, 0
      %p90 = por %p88, %p89
      %s91 = ssub.s32 %s27, %s34
      %p92 = scmp.eq.s32.totalorder %s91, 0
      %s94 = sadd.s32 %s93, 1
      %s95 = scalar_select %p92, %s93, %s94
      %p98 = pneg %p92
      %p99 = scmp.eq.s32.totalorder %s19, 3
      %p100 = por %p98, %p99
      %p101 = scmp.ne.s32.totalorder %s93, %s96
      %p102 = scmp.eq.s32.totalorder %s19, 0
      %p103 = por %p101, %p102
      %p104 = scmp.ne.s32.totalorder %s93, %s96
      %p105 = scmp.eq.s32.totalorder %s24, 3
      %p106 = por %p104, %p105
      %p107 = scmp.ne.s32.totalorder %s96, %s97
      %p108 = scmp.eq.s32.totalorder %s24, 0
      %p109 = por %p107, %p108
      %p110 = scmp.ne.s32.totalorder %s96, %s97
      %p111 = scmp.eq.s32.totalorder %s25, 3
      %p112 = por %p110, %p111
      %p114 = scmp.ne.s32.totalorder %s97, %s113
      %p115 = scmp.eq.s32.totalorder %s25, 0
      %p116 = por %p114, %p115
      %s117 = ssub.s32 %s27, %s34
      %p118 = scmp.eq.s32.totalorder %s117, 0
      %s120 = sadd.s32 %s119, 1
      %s121 = scalar_select %p118, %s119, %s120
      %p124 = pneg %p118
      %p125 = scmp.eq.s32.totalorder %s19, 3
      %p126 = por %p124, %p125
      %p127 = scmp.ne.s32.totalorder %s119, %s122
      %p128 = scmp.eq.s32.totalorder %s19, 0
      %p129 = por %p127, %p128
      %p130 = scmp.ne.s32.totalorder %s119, %s122
      %p131 = scmp.eq.s32.totalorder %s24, 3
      %p132 = por %p130, %p131
      %p133 = scmp.ne.s32.totalorder %s122, %s123
      %p134 = scmp.eq.s32.totalorder %s24, 0
      %p135 = por %p133, %p134
      %p136 = scmp.ne.s32.totalorder %s122, %s123
      %p137 = scmp.eq.s32.totalorder %s25, 3
      %p138 = por %p136, %p137
      %p140 = scmp.ne.s32.totalorder %s123, %s139
      %p141 = scmp.eq.s32.totalorder %s25, 0
      %p142 = por %p140, %p141
      %s143 = ssub.s32 %s27, %s34
      %p144 = scmp.eq.s32.totalorder %s143, 0
      %s146 = sadd.s32 %s145, 1
      %s147 = scalar_select %p144, %s145, %s146
      %p150 = pneg %p144
      %p151 = scmp.eq.s32.totalorder %s19, 3
      %p152 = por %p150, %p151
      %p153 = scmp.ne.s32.totalorder %s145, %s148
      %p154 = scmp.eq.s32.totalorder %s19, 0
      %p155 = por %p153, %p154
      %p156 = scmp.ne.s32.totalorder %s145, %s148
      %p157 = scmp.eq.s32.totalorder %s24, 3
      %p158 = por %p156, %p157
      %p159 = scmp.ne.s32.totalorder %s148, %s149
      %p160 = scmp.eq.s32.totalorder %s24, 0
      %p161 = por %p159, %p160
      %p162 = scmp.ne.s32.totalorder %s148, %s149
      %p163 = scmp.eq.s32.totalorder %s25, 3
      %p164 = por %p162, %p163
      %p166 = scmp.ne.s32.totalorder %s149, %s165
      %p167 = scmp.eq.s32.totalorder %s25, 0
      %p168 = por %p166, %p167
      %s169 = ssub.s32 %s27, %s34
      %p170 = scmp.eq.s32.totalorder %s169, 0
      %s172 = sadd.s32 %s171, 1
      %s173 = scalar_select %p170, %s171, %s172
      %p176 = pneg %p170
      %p177 = scmp.eq.s32.totalorder %s19, 3
      %p178 = por %p176, %p177
      %p179 = scmp.ne.s32.totalorder %s171, %s174
      %p180 = scmp.eq.s32.totalorder %s19, 0
      %p181 = por %p179, %p180
      %p182 = scmp.ne.s32.totalorder %s171, %s174
      %p183 = scmp.eq.s32.totalorder %s24, 3
      %p184 = por %p182, %p183
      %p185 = scmp.ne.s32.totalorder %s174, %s175
      %p186 = scmp.eq.s32.totalorder %s24, 0
      %p187 = por %p185, %p186
      %p188 = scmp.ne.s32.totalorder %s174, %s175
      %p189 = scmp.eq.s32.totalorder %s25, 3
      %p190 = por %p188, %p189
      %p192 = scmp.ne.s32.totalorder %s175, %s191
      %p193 = scmp.eq.s32.totalorder %s25, 0
      %p194 = por %p192, %p193
      %s195 = ssub.s32 %s27, %s34
      %p196 = scmp.eq.s32.totalorder %s195, 0
      %s198 = sadd.s32 %s197, 1
      %s199 = scalar_select %p196, %s197, %s198
      %p202 = pneg %p196
      %p203 = scmp.eq.s32.totalorder %s19, 3
      %p204 = por %p202, %p203
      %p205 = scmp.ne.s32.totalorder %s197, %s200
      %p206 = scmp.eq.s32.totalorder %s19, 0
      %p207 = por %p205, %p206
      %p208 = scmp.ne.s32.totalorder %s197, %s200
      %p209 = scmp.eq.s32.totalorder %s24, 3
      %p210 = por %p208, %p209
      %p211 = scmp.ne.s32.totalorder %s200, %s201
      %p212 = scmp.eq.s32.totalorder %s24, 0
      %p213 = por %p211, %p212
      %p214 = scmp.ne.s32.totalorder %s200, %s201
      %p215 = scmp.eq.s32.totalorder %s25, 3
      %p216 = por %p214, %p215
      %p218 = scmp.ne.s32.totalorder %s201, %s217
      %p219 = scmp.eq.s32.totalorder %s25, 0
      %p220 = por %p218, %p219
      %s221 = ssub.s32 %s27, %s34
      %p222 = scmp.eq.s32.totalorder %s221, 0
      %s224 = sadd.s32 %s223, 1
      %s225 = scalar_select %p222, %s223, %s224
      %p228 = pneg %p222
      %p229 = scmp.eq.s32.totalorder %s19, 3
      %p230 = por %p228, %p229
      %p231 = scmp.ne.s32.totalorder %s223, %s226
      %p232 = scmp.eq.s32.totalorder %s19, 0
      %p233 = por %p231, %p232
      %p234 = scmp.ne.s32.totalorder %s223, %s226
      %p235 = scmp.eq.s32.totalorder %s24, 3
      %p236 = por %p234, %p235
      %p237 = scmp.ne.s32.totalorder %s226, %s227
      %p238 = scmp.eq.s32.totalorder %s24, 0
      %p239 = por %p237, %p238
      %p240 = scmp.ne.s32.totalorder %s226, %s227
      %p241 = scmp.eq.s32.totalorder %s25, 3
      %p242 = por %p240, %p241
      %p244 = scmp.ne.s32.totalorder %s227, %s243
      %p245 = scmp.eq.s32.totalorder %s25, 0
      %p246 = por %p244, %p245
      %s247 = ssub.s32 %s27, %s34
      %p248 = scmp.eq.s32.totalorder %s247, 0
      %s250 = sadd.s32 %s249, 1
      %s251 = scalar_select %p248, %s249, %s250
      %p254 = pneg %p248
      %p255 = scmp.eq.s32.totalorder %s19, 3
      %p256 = por %p254, %p255
      %p257 = scmp.ne.s32.totalorder %s249, %s252
      %p258 = scmp.eq.s32.totalorder %s19, 0
      %p259 = por %p257, %p258
      %p260 = scmp.ne.s32.totalorder %s249, %s252
      %p261 = scmp.eq.s32.totalorder %s24, 3
      %p262 = por %p260, %p261
      %p263 = scmp.ne.s32.totalorder %s252, %s253
      %p264 = scmp.eq.s32.totalorder %s24, 0
      %p265 = por %p263, %p264
      %p266 = scmp.ne.s32.totalorder %s252, %s253
      %p267 = scmp.eq.s32.totalorder %s25, 3
      %p268 = por %p266, %p267
      %p270 = scmp.ne.s32.totalorder %s253, %s269
      %p271 = scmp.eq.s32.totalorder %s25, 0
      %p272 = por %p270, %p271
      %s274 = sadd.s32 %s273, 1
      %p277 = scmp.eq.s32.totalorder %s19, 3
      %p278 = scmp.ne.s32.totalorder %s273, %s275
      %p279 = scmp.eq.s32.totalorder %s19, 0
      %p280 = por %p278, %p279
      %p281 = scmp.ne.s32.totalorder %s273, %s275
      %p282 = scmp.eq.s32.totalorder %s24, 3
      %p283 = por %p281, %p282
      %p284 = scmp.ne.s32.totalorder %s275, %s276
      %p285 = scmp.eq.s32.totalorder %s24, 0
      %p286 = por %p284, %p285
      %p287 = scmp.ne.s32.totalorder %s275, %s276
      %p288 = scmp.eq.s32.totalorder %s25, 3
      %p289 = por %p287, %p288
      %p291 = scmp.ne.s32.totalorder %s276, %s290
      %p292 = scmp.eq.s32.totalorder %s25, 0
      %p293 = por %p291, %p292
      %s295 = sadd.s32 %s294, 1
      %p298 = scmp.eq.s32.totalorder %s19, 3
      %p299 = scmp.ne.s32.totalorder %s294, %s296
      %p300 = scmp.eq.s32.totalorder %s19, 0
      %p301 = por %p299, %p300
      %p302 = scmp.ne.s32.totalorder %s294, %s296
      %p303 = scmp.eq.s32.totalorder %s24, 3
      %p304 = por %p302, %p303
      %p305 = scmp.ne.s32.totalorder %s296, %s297
      %p306 = scmp.eq.s32.totalorder %s24, 0
      %p307 = por %p305, %p306
      %p308 = scmp.ne.s32.totalorder %s296, %s297
      %p309 = scmp.eq.s32.totalorder %s25, 3
      %p310 = por %p308, %p309
      %p312 = scmp.ne.s32.totalorder %s297, %s311
      %p313 = scmp.eq.s32.totalorder %s25, 0
      %p314 = por %p312, %p313
      %s316 = sadd.s32 %s315, 1
      %p319 = scmp.eq.s32.totalorder %s19, 3
      %p320 = scmp.ne.s32.totalorder %s315, %s317
      %p321 = scmp.eq.s32.totalorder %s19, 0
      %p322 = por %p320, %p321
      %p323 = scmp.ne.s32.totalorder %s315, %s317
      %p324 = scmp.eq.s32.totalorder %s24, 3
      %p325 = por %p323, %p324
      %p326 = scmp.ne.s32.totalorder %s317, %s318
      %p327 = scmp.eq.s32.totalorder %s24, 0
      %p328 = por %p326, %p327
      %p329 = scmp.ne.s32.totalorder %s317, %s318
      %p330 = scmp.eq.s32.totalorder %s25, 3
      %p331 = por %p329, %p330
      %p333 = scmp.ne.s32.totalorder %s318, %s332
      %p334 = scmp.eq.s32.totalorder %s25, 0
      %p335 = por %p333, %p334
      %s336 = ssub.s32 %s26, %s38
      %p337 = scmp.eq.s32.totalorder %s336, 0
      %s339 = sadd.s32 %s338, 1
      %s340 = scalar_select %p337, %s338, %s339
      %p343 = pneg %p337
      %p344 = scmp.eq.s32.totalorder %s19, 3
      %p345 = por %p343, %p344
      %p346 = scmp.ne.s32.totalorder %s338, %s341
      %p347 = scmp.eq.s32.totalorder %s19, 0
      %p348 = por %p346, %p347
      %p349 = scmp.ne.s32.totalorder %s338, %s341
      %p350 = scmp.eq.s32.totalorder %s24, 3
      %p351 = por %p349, %p350
      %p352 = scmp.ne.s32.totalorder %s341, %s342
      %p353 = scmp.eq.s32.totalorder %s24, 0
      %p354 = por %p352, %p353
      %p355 = scmp.ne.s32.totalorder %s341, %s342
      %p356 = scmp.eq.s32.totalorder %s25, 3
      %p357 = por %p355, %p356
      %p359 = scmp.ne.s32.totalorder %s342, %s358
      %p360 = scmp.eq.s32.totalorder %s25, 0
      %p361 = por %p359, %p360
      %p362 = scmp.le.s32.totalorder 1, %s19
      %p363 = scmp.lt.s32.totalorder %s19, 5
      %p364 = pnand %p362, %p363
      %p365 = pneg %p364
      // Predicated region
      $region9: #{tpu_custom_call.1} parent=5 // pred_check
        _
      $region10: #{tpu_custom_call.1} parent=5 // pred_check_branch
        %367 = sbr.rel (%p364) target = $region12
      $region11: #{tpu_custom_call.1} parent=5 // pred_region
        %s368 = ssub.s32 %s19, 1
        // Predicated region
        $region13: #{tpu_custom_call.1} parent=11 // pred_check
          %p369 = pneg %p57
        $region14: #{tpu_custom_call.1} parent=11 // pred_check_branch
          %371 = sbr.rel (%p369) target = $region16
        $region15: #{tpu_custom_call.1} parent=11 // pred_region
          %s372 = smul.u32 2, %s28
          %p373 = scmp.lt.s32.totalorder %s372, 1
          %s374 = scalar_select %p373, %s372, 1
          %s375 = smul.addr %s374, 8
          %s376 = scalar_lea.vmem %s0, %s375
          %s377 = smul.u32 2, %s28
        $region16: #{tpu_custom_call.1} parent=11 // pred_fallthru
          _
        // Predicated region
        $region17: #{tpu_custom_call.1} parent=11 // pred_check
          %p378 = pneg %p83
        $region18: #{tpu_custom_call.1} parent=11 // pred_check_branch
          %380 = sbr.rel (%p378) target = $region20
        $region19: #{tpu_custom_call.1} parent=11 // pred_region
          %s381 = smul.u32 2, %s28
          %p382 = scmp.lt.s32.totalorder %s381, 1
          %s383 = scalar_select %p382, %s381, 1
          %s384 = scalar_lea.vmem %s1, %s383
          %s385 = smul.u32 2, %s28
        $region20: #{tpu_custom_call.1} parent=11 // pred_fallthru
          _
        // Predicated region
        $region21: #{tpu_custom_call.1} parent=11 // pred_check
          %p386 = pneg %p286
        $region22: #{tpu_custom_call.1} parent=11 // pred_check_branch
          %388 = sbr.rel (%p386) target = $region24
        $region23: #{tpu_custom_call.1} parent=11 // pred_region
          _
        $region24: #{tpu_custom_call.1} parent=11 // pred_fallthru
          _
        // Predicated region
        $region25: #{tpu_custom_call.1} parent=11 // pred_check
          %p389 = pneg %p307
        $region26: #{tpu_custom_call.1} parent=11 // pred_check_branch
          %391 = sbr.rel (%p389) target = $region28
        $region27: #{tpu_custom_call.1} parent=11 // pred_region
          _
        $region28: #{tpu_custom_call.1} parent=11 // pred_fallthru
          _
        // Predicated region
        $region29: #{tpu_custom_call.1} parent=11 // pred_check
          %p392 = pneg %p328
        $region30: #{tpu_custom_call.1} parent=11 // pred_check_branch
          %394 = sbr.rel (%p392) target = $region32
        $region31: #{tpu_custom_call.1} parent=11 // pred_region
          _
        $region32: #{tpu_custom_call.1} parent=11 // pred_fallthru
          _
      $region12: #{tpu_custom_call.1} parent=5 // pred_fallthru
        _
      %p395 = scmp.lt.s32.totalorder %s19, 4
      // Predicated region
      $region33: #{tpu_custom_call.1} parent=5 // pred_check
        %p396 = pneg %p395
      $region34: #{tpu_custom_call.1} parent=5 // pred_check_branch
        %398 = sbr.rel (%p396) target = $region36
      $region35: #{tpu_custom_call.1} parent=5 // pred_region
        // Predicated region
        $region37: #{tpu_custom_call.1} parent=35 // pred_check
          %p399 = pneg %p103
        $region38: #{tpu_custom_call.1} parent=35 // pred_check_branch
          %401 = sbr.rel (%p399) target = $region40
        $region39: #{tpu_custom_call.1} parent=35 // pred_region
          %p402 = scmp.lt.s32.totalorder %s27, 3
          %s403 = scalar_select %p402, %s27, 3
          %s404 = smul.addr %s403, 4
          %s405 = smul.addr %s404, 4
          %s406 = scalar_lea.vmem %s2, %s405
        $region40: #{tpu_custom_call.1} parent=35 // pred_fallthru
          _
        // Predicated region
        $region41: #{tpu_custom_call.1} parent=35 // pred_check
          %p407 = pneg %p129
        $region42: #{tpu_custom_call.1} parent=35 // pred_check_branch
          %409 = sbr.rel (%p407) target = $region44
        $region43: #{tpu_custom_call.1} parent=35 // pred_region
          %p410 = scmp.lt.s32.totalorder %s27, 3
          %s411 = scalar_select %p410, %s27, 3
          %s412 = scalar_lea.vmem %s3, %s411
        $region44: #{tpu_custom_call.1} parent=35 // pred_fallthru
          _
        // Predicated region
        $region45: #{tpu_custom_call.1} parent=35 // pred_check
          %p413 = pneg %p155
        $region46: #{tpu_custom_call.1} parent=35 // pred_check_branch
          %415 = sbr.rel (%p413) target = $region48
        $region47: #{tpu_custom_call.1} parent=35 // pred_region
          %p416 = scmp.lt.s32.totalorder %s27, 3
          %s417 = scalar_select %p416, %s27, 3
          %s418 = smul.addr %s417, 4
          %s419 = smul.addr %s418, 4
          %s420 = scalar_lea.vmem %s4, %s419
        $region48: #{tpu_custom_call.1} parent=35 // pred_fallthru
          _
        // Predicated region
        $region49: #{tpu_custom_call.1} parent=35 // pred_check
          %p421 = pneg %p181
        $region50: #{tpu_custom_call.1} parent=35 // pred_check_branch
          %423 = sbr.rel (%p421) target = $region52
        $region51: #{tpu_custom_call.1} parent=35 // pred_region
          %p424 = scmp.lt.s32.totalorder %s27, 3
          %s425 = scalar_select %p424, %s27, 3
          %s426 = scalar_lea.vmem %s5, %s425
        $region52: #{tpu_custom_call.1} parent=35 // pred_fallthru
          _
        // Predicated region
        $region53: #{tpu_custom_call.1} parent=35 // pred_check
          %p427 = pneg %p207
        $region54: #{tpu_custom_call.1} parent=35 // pred_check_branch
          %429 = sbr.rel (%p427) target = $region56
        $region55: #{tpu_custom_call.1} parent=35 // pred_region
          %p430 = scmp.lt.s32.totalorder %s27, 3
          %s431 = scalar_select %p430, %s27, 3
          %s432 = smul.addr %s431, 4
          %s433 = smul.addr %s432, 4
          %s434 = scalar_lea.vmem %s6, %s433
        $region56: #{tpu_custom_call.1} parent=35 // pred_fallthru
          _
        // Predicated region
        $region57: #{tpu_custom_call.1} parent=35 // pred_check
          %p435 = pneg %p233
        $region58: #{tpu_custom_call.1} parent=35 // pred_check_branch
          %437 = sbr.rel (%p435) target = $region60
        $region59: #{tpu_custom_call.1} parent=35 // pred_region
          %p438 = scmp.lt.s32.totalorder %s27, 3
          %s439 = scalar_select %p438, %s27, 3
          %s440 = scalar_lea.vmem %s7, %s439
        $region60: #{tpu_custom_call.1} parent=35 // pred_fallthru
          _
        // Predicated region
        $region61: #{tpu_custom_call.1} parent=35 // pred_check
          %p441 = pneg %p259
        $region62: #{tpu_custom_call.1} parent=35 // pred_check_branch
          %443 = sbr.rel (%p441) target = $region64
        $region63: #{tpu_custom_call.1} parent=35 // pred_region
          %p444 = scmp.lt.s32.totalorder %s27, 3
          %s445 = scalar_select %p444, %s27, 3
          %s446 = smul.addr %s445, 4
          %s447 = scalar_lea.vmem %s8, %s446
        $region64: #{tpu_custom_call.1} parent=35 // pred_fallthru
          _
      $region36: #{tpu_custom_call.1} parent=5 // pred_fallthru
        _
      %p448 = scmp.le.s32.totalorder 1, %s19
      %p449 = scmp.lt.s32.totalorder %s19, 5
      %p450 = pnand %p448, %p449
      %p451 = pneg %p450
      // Predicated region
      $region65: #{tpu_custom_call.1} parent=5 // pred_check
        _
      $region66: #{tpu_custom_call.1} parent=5 // pred_check_branch
        %453 = sbr.rel (%p450) target = $region68
      $region67: #{tpu_custom_call.1} parent=5 // pred_region
        %s454 = ssub.s32 %s19, 1
        %s455 = smul.u32 2, %s28
        %p456 = scmp.lt.s32.totalorder %s455, 1
        %s457 = scalar_select %p456, %s455, 1
        %s458 = smul.addr %s457, 8
        %s459 = scalar_lea.vmem %s0, %s458
        %p460 = pneg %p57
        %p461 = pneg %p54
        %s462 = smul.u32 2, %s28
        %p463 = scmp.lt.s32.totalorder %s462, 1
        %s464 = scalar_select %p463, %s462, 1
        %s465 = scalar_lea.vmem %s1, %s464
        %p466 = pneg %p83
        %p467 = pneg %p80
        %p468 = scmp.lt.s32.totalorder %s29, 3
        %s469 = scalar_select %p468, %s29, 3
        %s470 = smul.addr %s469, 4
        %s471 = smul.addr %s470, 4
        %s472 = scalar_lea.vmem %s2, %s471
        %p473 = pneg %p109
        %p474 = pneg %p106
        %p475 = scmp.lt.s32.totalorder %s29, 3
        %s476 = scalar_select %p475, %s29, 3
        %s477 = scalar_lea.vmem %s3, %s476
        %p478 = pneg %p135
        %p479 = pneg %p132
        %p480 = scmp.lt.s32.totalorder %s29, 3
        %s481 = scalar_select %p480, %s29, 3
        %s482 = smul.addr %s481, 4
        %s483 = smul.addr %s482, 4
        %s484 = scalar_lea.vmem %s4, %s483
        %p485 = pneg %p161
        %p486 = pneg %p158
        %p487 = scmp.lt.s32.totalorder %s29, 3
        %s488 = scalar_select %p487, %s29, 3
        %s489 = scalar_lea.vmem %s5, %s488
        %p490 = pneg %p187
        %p491 = pneg %p184
        %p492 = scmp.lt.s32.totalorder %s29, 3
        %s493 = scalar_select %p492, %s29, 3
        %s494 = smul.addr %s493, 4
        %s495 = smul.addr %s494, 4
        %s496 = scalar_lea.vmem %s6, %s495
        %p497 = pneg %p213
        %p498 = pneg %p210
        %p499 = scmp.lt.s32.totalorder %s29, 3
        %s500 = scalar_select %p499, %s29, 3
        %s501 = scalar_lea.vmem %s7, %s500
        %p502 = pneg %p239
        %p503 = pneg %p236
        %p504 = scmp.lt.s32.totalorder %s29, 3
        %s505 = scalar_select %p504, %s29, 3
        %s506 = smul.addr %s505, 4
        %s507 = scalar_lea.vmem %s8, %s506
        %p508 = pneg %p265
        %p509 = pneg %p262
        %p510 = pneg %p286
        %p511 = pneg %p283
        %p512 = pneg %p307
        %p513 = pneg %p304
        %p514 = pneg %p328
        %p515 = pneg %p325
        %p516 = pneg %p354
        %p517 = pneg %p351
        %s518 = smul.u32 2, %s28
        %p519 = scmp.lt.s32.totalorder %s518, 1
        %s520 = scalar_select %p519, %s518, 1
        %s521 = smul.addr %s520, 8
        %s522 = scalar_lea.vmem %s0, %s521
        %s523 = smul.u32 2, %s28
        %s524 = smul.u32 2, %s28
        %p525 = scmp.lt.s32.totalorder %s524, 1
        %s526 = scalar_select %p525, %s524, 1
        %s527 = scalar_lea.vmem %s1, %s526
        %s528 = smul.u32 2, %s28
        %p529 = scmp.lt.s32.totalorder %s29, 3
        %s530 = scalar_select %p529, %s29, 3
        %s531 = smul.addr %s530, 4
        %s532 = smul.addr %s531, 4
        %s533 = scalar_lea.vmem %s2, %s532
        %p534 = scmp.lt.s32.totalorder %s29, 3
        %s535 = scalar_select %p534, %s29, 3
        %s536 = scalar_lea.vmem %s3, %s535
        %p537 = scmp.lt.s32.totalorder %s29, 3
        %s538 = scalar_select %p537, %s29, 3
        %s539 = smul.addr %s538, 4
        %s540 = smul.addr %s539, 4
        %s541 = scalar_lea.vmem %s4, %s540
        %p542 = scmp.lt.s32.totalorder %s29, 3
        %s543 = scalar_select %p542, %s29, 3
        %s544 = scalar_lea.vmem %s5, %s543
        %p545 = scmp.lt.s32.totalorder %s29, 3
        %s546 = scalar_select %p545, %s29, 3
        %s547 = smul.addr %s546, 4
        %s548 = smul.addr %s547, 4
        %s549 = scalar_lea.vmem %s6, %s548
        %p550 = scmp.lt.s32.totalorder %s29, 3
        %s551 = scalar_select %p550, %s29, 3
        %s552 = scalar_lea.vmem %s7, %s551
        %p553 = scmp.lt.s32.totalorder %s29, 3
        %s554 = scalar_select %p553, %s29, 3
        %s555 = smul.addr %s554, 4
        %s556 = scalar_lea.vmem %s8, %s555
        %s557 = smul.u32 2, %s28
        %p559 = scmp.eq.s32.totalorder %s29, 0
        // Predicated region
        $region69: #{tpu_custom_call.1} parent=67 // pred_check
          %p560 = pneg %p559
        $region70: #{tpu_custom_call.1} parent=67 // pred_check_branch
          %562 = sbr.rel (%p560) target = $region72
        $region71: #{tpu_custom_call.1} parent=67 // pred_region
          %vm563 = vcmask 261120
          %564 = vst.msk [vmem:[#allocation2] sm:$0xff] %vm563, 0.0
          %565 = vst.msk [vmem:[#allocation2 + $0x8] sm:$0xff] %vm563, 0.0
        $region72: #{tpu_custom_call.1} parent=67 // pred_fallthru
          _
        %v566 = vld [vmem:[%s522] sm:$0xff]
        %v567 = vld [vmem:[%s522 + $0x8] sm:$0xff]
        %v568 = vpack.c.bf16 %v567, %v566
        %v569 = vld [vmem:[%s533] sm:$0xf]
        %v570 = vld [vmem:[%s533 + $0x4] sm:$0xf]
        %v571 = vld [vmem:[%s533 + $0x8] sm:$0xf]
        %v572 = vld [vmem:[%s533 + $0xc] sm:$0xf]
        %v573 = vld [vmem:[%s536] sm:$0x1]
        %v575 = vlaneseq
        %v576 = vshrl.u32 %v575, 7
        %v577 = vsub.s32 0, %v576
        %v578 = vrot.slane %v573, %v577
        %v584 = vunpack.c.l.b16 %v569
        %v585 = vunpack.c.l.b16 %v570
        %v586 = vunpack.c.l.b16 %v571
        %v587 = vunpack.c.l.b16 %v572
        %v588 = vpack.c.b16 %v585, %v584
        %v589 = vpack.c.b16 %v587, %v586
        %vm592 = vcmask 261120
        %v594 = vsel %vm592, %v568, 0
        %596 = vmatprep.subr.bf16.mxu0 0
        %597 = vmatpush1.bf16.msra.mxu0 %v588
        %598 = vmatprep.subr.bf16.mxu0 0
        %599 = vmatpush1.bf16.msra.mxu0 %v589
        %600 = vmatprep.subr.bf16.mxu0 0
        %601 = vmatpush1.bf16.msra.mxu0 0
        %602 = vmatprep.subr.bf16.mxu0 0
        %603 = vmatpush1.bf16.msra.mxu0 0
        %604 = vmatprep.subr.bf16.mxu0 0
        %605 = vmatpush1.bf16.msra.mxu0 0
        %606 = vmatprep.subr.bf16.mxu0 0
        %607 = vmatpush1.bf16.msra.mxu0 0
        %608 = vmatprep.subr.bf16.mxu0 0
        %609 = vmatpush1.bf16.msra.mxu0 0
        %610 = vmatprep.subr.bf16.mxu0 0
        %611 = vmatpush1.bf16.msra.mxu0 0
        %612 = vmatprep.subr.bf16.mxu0 0
        %613 = vmatpush1.bf16.msra.mxu0 0
        %614 = vmatprep.subr.bf16.mxu0 0
        %615 = vmatpush1.bf16.msra.mxu0 0
        %616 = vmatprep.subr.bf16.mxu0 0
        %617 = vmatpush1.bf16.msra.mxu0 0
        %618 = vmatprep.subr.bf16.mxu0 0
        %619 = vmatpush1.bf16.msra.mxu0 0
        %620 = vmatprep.subr.bf16.mxu0 0
        %621 = vmatpush1.bf16.msra.mxu0 0
        %622 = vmatprep.subr.bf16.mxu0 0
        %623 = vmatpush1.bf16.msra.mxu0 0
        %624 = vmatprep.subr.bf16.mxu0 0
        %625 = vmatpush1.bf16.msra.mxu0 0
        %626 = vmatprep.subr.bf16.mxu0 0
        %627 = vmatpush1.bf16.msra.mxu0 0
        %628 = vmatprep.mubr.bf16.mxu0 0
        %629 = vmatmul.mubr.bf16.gmra.mrb[0].mxu0 %v594
        %v630 = vpop.f32.mrb[0].mxu0
        %v631 = vadd.f32 %v578, %v630
        %v632 = vpop.f32.mrb[0].mxu0
        %v633 = vpop.f32.mrb[0].mxu0
        %v634 = vadd.f32 %v578, %v633
        %v635 = vpop.f32.mrb[0].mxu0
        %636 = vdwg.mxu0
        %v637 = vld [vmem:[%s541] sm:$0xf]
        %v638 = vld [vmem:[%s541 + $0x4] sm:$0xf]
        %v639 = vld [vmem:[%s541 + $0x8] sm:$0xf]
        %v640 = vld [vmem:[%s541 + $0xc] sm:$0xf]
        %v641 = vld [vmem:[%s544] sm:$0x1]
        %v643 = vlaneseq
        %v644 = vshrl.u32 %v643, 7
        %v645 = vsub.s32 0, %v644
        %v646 = vrot.slane %v641, %v645
        %v652 = vunpack.c.l.b16 %v637
        %v653 = vunpack.c.l.b16 %v638
        %v654 = vunpack.c.l.b16 %v639
        %v655 = vunpack.c.l.b16 %v640
        %v656 = vpack.c.b16 %v653, %v652
        %v657 = vpack.c.b16 %v655, %v654
        %660 = vmatprep.subr.bf16.mxu0 0
        %661 = vmatpush1.bf16.msra.mxu0 %v656
        %662 = vmatprep.subr.bf16.mxu0 0
        %663 = vmatpush1.bf16.msra.mxu0 %v657
        %664 = vmatprep.subr.bf16.mxu0 0
        %665 = vmatpush1.bf16.msra.mxu0 0
        %666 = vmatprep.subr.bf16.mxu0 0
        %667 = vmatpush1.bf16.msra.mxu0 0
        %668 = vmatprep.subr.bf16.mxu0 0
        %669 = vmatpush1.bf16.msra.mxu0 0
        %670 = vmatprep.subr.bf16.mxu0 0
        %671 = vmatpush1.bf16.msra.mxu0 0
        %672 = vmatprep.subr.bf16.mxu0 0
        %673 = vmatpush1.bf16.msra.mxu0 0
        %674 = vmatprep.subr.bf16.mxu0 0
        %675 = vmatpush1.bf16.msra.mxu0 0
        %676 = vmatprep.subr.bf16.mxu0 0
        %677 = vmatpush1.bf16.msra.mxu0 0
        %678 = vmatprep.subr.bf16.mxu0 0
        %679 = vmatpush1.bf16.msra.mxu0 0
        %680 = vmatprep.subr.bf16.mxu0 0
        %681 = vmatpush1.bf16.msra.mxu0 0
        %682 = vmatprep.subr.bf16.mxu0 0
        %683 = vmatpush1.bf16.msra.mxu0 0
        %684 = vmatprep.subr.bf16.mxu0 0
        %685 = vmatpush1.bf16.msra.mxu0 0
        %686 = vmatprep.subr.bf16.mxu0 0
        %687 = vmatpush1.bf16.msra.mxu0 0
        %688 = vmatprep.subr.bf16.mxu0 0
        %689 = vmatpush1.bf16.msra.mxu0 0
        %690 = vmatprep.subr.bf16.mxu0 0
        %691 = vmatpush1.bf16.msra.mxu0 0
        %692 = vmatprep.mubr.bf16.mxu0 0
        %693 = vmatmul.mubr.bf16.gmra.mrb[0].mxu0 %v594
        %v694 = vpop.f32.mrb[0].mxu0
        %v695 = vadd.f32 %v646, %v694
        %v696 = vpop.f32.mrb[0].mxu0
        %v697 = vpop.f32.mrb[0].mxu0
        %v698 = vadd.f32 %v646, %v697
        %v699 = vpop.f32.mrb[0].mxu0
        %700 = vdwg.mxu0
        %v701 = vld [vmem:[%s549] sm:$0xf]
        %v702 = vld [vmem:[%s549 + $0x4] sm:$0xf]
        %v703 = vld [vmem:[%s549 + $0x8] sm:$0xf]
        %v704 = vld [vmem:[%s549 + $0xc] sm:$0xf]
        %v705 = vld [vmem:[%s552] sm:$0x1]
        %v707 = vlaneseq
        %v708 = vshrl.u32 %v707, 7
        %v709 = vsub.s32 0, %v708
        %v710 = vrot.slane %v705, %v709
        %v716 = vunpack.c.l.b16 %v701
        %v717 = vunpack.c.l.b16 %v702
        %v718 = vunpack.c.l.b16 %v703
        %v719 = vunpack.c.l.b16 %v704
        %v720 = vpack.c.b16 %v717, %v716
        %v721 = vpack.c.b16 %v719, %v718
        %724 = vmatprep.subr.bf16.mxu0 0
        %725 = vmatpush1.bf16.msra.mxu0 %v720
        %726 = vmatprep.subr.bf16.mxu0 0
        %727 = vmatpush1.bf16.msra.mxu0 %v721
        %728 = vmatprep.subr.bf16.mxu0 0
        %729 = vmatpush1.bf16.msra.mxu0 0
        %730 = vmatprep.subr.bf16.mxu0 0
        %731 = vmatpush1.bf16.msra.mxu0 0
        %732 = vmatprep.subr.bf16.mxu0 0
        %733 = vmatpush1.bf16.msra.mxu0 0
        %734 = vmatprep.subr.bf16.mxu0 0
        %735 = vmatpush1.bf16.msra.mxu0 0
        %736 = vmatprep.subr.bf16.mxu0 0
        %737 = vmatpush1.bf16.msra.mxu0 0
        %738 = vmatprep.subr.bf16.mxu0 0
        %739 = vmatpush1.bf16.msra.mxu0 0
        %740 = vmatprep.subr.bf16.mxu0 0
        %741 = vmatpush1.bf16.msra.mxu0 0
        %742 = vmatprep.subr.bf16.mxu0 0
        %743 = vmatpush1.bf16.msra.mxu0 0
        %744 = vmatprep.subr.bf16.mxu0 0
        %745 = vmatpush1.bf16.msra.mxu0 0
        %746 = vmatprep.subr.bf16.mxu0 0
        %747 = vmatpush1.bf16.msra.mxu0 0
        %748 = vmatprep.subr.bf16.mxu0 0
        %749 = vmatpush1.bf16.msra.mxu0 0
        %750 = vmatprep.subr.bf16.mxu0 0
        %751 = vmatpush1.bf16.msra.mxu0 0
        %752 = vmatprep.subr.bf16.mxu0 0
        %753 = vmatpush1.bf16.msra.mxu0 0
        %754 = vmatprep.subr.bf16.mxu0 0
        %755 = vmatpush1.bf16.msra.mxu0 0
        %756 = vmatprep.mubr.bf16.mxu0 0
        %757 = vmatmul.mubr.bf16.gmra.mrb[0].mxu0 %v594
        %v758 = vpop.f32.mrb[0].mxu0
        %v759 = vadd.f32 %v710, %v758
        %v760 = vpop.f32.mrb[0].mxu0
        %v761 = vpop.f32.mrb[0].mxu0
        %v762 = vadd.f32 %v710, %v761
        %v763 = vpop.f32.mrb[0].mxu0
        %764 = vdwg.mxu0
        %v765 = vpack.c.bf16 %v631, %v631
        %v766 = vpack.c.bf16 %v634, %v634
        %v767 = vpack.c.bf16 %v695, %v695
        %v768 = vpack.c.bf16 %v698, %v698
        %v769 = vpack.c.bf16 %v759, %v759
        %v770 = vpack.c.bf16 %v762, %v762
        %v771 = vld [vmem:[%s527] sm:$0x1]
        %v772 = vld [vmem:[%s527 + $0x1] sm:$0x1]
        %v775 = vlaneseq
        %v776 = vshrl.u32 %v775, 7
        %v777 = vsub.s32 0, %v776
        %v778 = vrot.slane %v771, %v777
        %v779 = vlaneseq
        %v780 = vshrl.u32 %v779, 7
        %v781 = vsub.s32 0, %v780
        %v782 = vrot.slane %v772, %v781
        %vm785 = vcmask 64512
        %v787 = vsel %vm785, %v765, 0
        %v790 = vsel %vm785, %v767, 0
        %792 = vmatprep.subr.bf16.mxu0 0
        %793 = vmatpush1.bf16.xpose.msra.mxu0 %v790
        %794 = vmatprep.subr.bf16.mxu0 0
        %795 = vmatpush1.bf16.xpose.msra.mxu0 0
        %796 = vmatprep.subr.bf16.mxu0 0
        %797 = vmatpush1.bf16.xpose.msra.mxu0 0
        %798 = vmatprep.subr.bf16.mxu0 0
        %799 = vmatpush1.bf16.xpose.msra.mxu0 0
        %800 = vmatprep.subr.bf16.mxu0 0
        %801 = vmatpush1.bf16.xpose.msra.mxu0 0
        %802 = vmatprep.subr.bf16.mxu0 0
        %803 = vmatpush1.bf16.xpose.msra.mxu0 0
        %804 = vmatprep.subr.bf16.mxu0 0
        %805 = vmatpush1.bf16.xpose.msra.mxu0 0
        %806 = vmatprep.subr.bf16.mxu0 0
        %807 = vmatpush1.bf16.xpose.msra.mxu0 0
        %808 = vmatprep.subr.bf16.mxu0 0
        %809 = vmatpush1.bf16.xpose.msra.mxu0 0
        %810 = vmatprep.subr.bf16.mxu0 0
        %811 = vmatpush1.bf16.xpose.msra.mxu0 0
        %812 = vmatprep.subr.bf16.mxu0 0
        %813 = vmatpush1.bf16.xpose.msra.mxu0 0
        %814 = vmatprep.subr.bf16.mxu0 0
        %815 = vmatpush1.bf16.xpose.msra.mxu0 0
        %816 = vmatprep.subr.bf16.mxu0 0
        %817 = vmatpush1.bf16.xpose.msra.mxu0 0
        %818 = vmatprep.subr.bf16.mxu0 0
        %819 = vmatpush1.bf16.xpose.msra.mxu0 0
        %820 = vmatprep.subr.bf16.mxu0 0
        %821 = vmatpush1.bf16.xpose.msra.mxu0 0
        %822 = vmatprep.subr.bf16.mxu0 0
        %823 = vmatpush1.bf16.xpose.msra.mxu0 0
        %824 = vmatprep.mubr.bf16.mxu0 0
        %825 = vmatmul.mubr.bf16.gmra.mrb[0].mxu0 %v787
        %v826 = vpop.f32.mrb[0].mxu0
        %v827 = vadd.f32 %v778, %v826
        %v828 = vpop.f32.mrb[0].mxu0
        %v829 = vpop.f32.mrb[0].mxu0
        %v830 = vpop.f32.mrb[0].mxu0
        %831 = vdwg.mxu0
        %v833 = vsel %vm785, %v766, 0
        %v836 = vsel %vm785, %v768, 0
        %838 = vmatprep.subr.bf16.mxu0 0
        %839 = vmatpush1.bf16.xpose.msra.mxu0 %v836
        %840 = vmatprep.subr.bf16.mxu0 0
        %841 = vmatpush1.bf16.xpose.msra.mxu0 0
        %842 = vmatprep.subr.bf16.mxu0 0
        %843 = vmatpush1.bf16.xpose.msra.mxu0 0
        %844 = vmatprep.subr.bf16.mxu0 0
        %845 = vmatpush1.bf16.xpose.msra.mxu0 0
        %846 = vmatprep.subr.bf16.mxu0 0
        %847 = vmatpush1.bf16.xpose.msra.mxu0 0
        %848 = vmatprep.subr.bf16.mxu0 0
        %849 = vmatpush1.bf16.xpose.msra.mxu0 0
        %850 = vmatprep.subr.bf16.mxu0 0
        %851 = vmatpush1.bf16.xpose.msra.mxu0 0
        %852 = vmatprep.subr.bf16.mxu0 0
        %853 = vmatpush1.bf16.xpose.msra.mxu0 0
        %854 = vmatprep.subr.bf16.mxu0 0
        %855 = vmatpush1.bf16.xpose.msra.mxu0 0
        %856 = vmatprep.subr.bf16.mxu0 0
        %857 = vmatpush1.bf16.xpose.msra.mxu0 0
        %858 = vmatprep.subr.bf16.mxu0 0
        %859 = vmatpush1.bf16.xpose.msra.mxu0 0
        %860 = vmatprep.subr.bf16.mxu0 0
        %861 = vmatpush1.bf16.xpose.msra.mxu0 0
        %862 = vmatprep.subr.bf16.mxu0 0
        %863 = vmatpush1.bf16.xpose.msra.mxu0 0
        %864 = vmatprep.subr.bf16.mxu0 0
        %865 = vmatpush1.bf16.xpose.msra.mxu0 0
        %866 = vmatprep.subr.bf16.mxu0 0
        %867 = vmatpush1.bf16.xpose.msra.mxu0 0
        %868 = vmatprep.subr.bf16.mxu0 0
        %869 = vmatpush1.bf16.xpose.msra.mxu0 0
        %870 = vmatprep.mubr.bf16.mxu0 0
        %871 = vmatmul.mubr.bf16.gmra.mrb[0].mxu0 %v833
        %v872 = vpop.f32.mrb[0].mxu0
        %v873 = vadd.f32 %v782, %v872
        %v874 = vpop.f32.mrb[0].mxu0
        %v875 = vpop.f32.mrb[0].mxu0
        %v876 = vpop.f32.mrb[0].mxu0
        %877 = vdwg.mxu0
        %v878 = vsel %vm785, %v827, -inf
        %879 = vmax.xlane.f32.xlu0 %v878
        %v880 = vpop.xlane.xlu0 %879
        %v881 = vsel %vm785, %v873, -inf
        %882 = vmax.xlane.f32.xlu0 %v881
        %v883 = vpop.xlane.xlu0 %882
        %v884 = vsub.f32 %v827, %v880
        %v885 = vsub.f32 %v873, %v883
        %v886 = vmul.f32 %v884, 1.442695
        %v887 = vpow.pop %v886
        %v888 = vmul.f32 %v885, 1.442695
        %v889 = vpow.pop %v888
        %v890 = vsel %vm785, %v887, 0.0
        %891 = vadd.xlane.f32.xlu0 %v890
        %v892 = vpop.xlane.xlu0 %891
        %v893 = vsel %vm785, %v889, 0.0
        %894 = vadd.xlane.f32.xlu0 %v893
        %v895 = vpop.xlane.xlu0 %894
        %v896 = vrcp.pop %v892
        %v897 = vrcp.pop %v895
        %v898 = vmul.f32 %v887, %v896
        %v899 = vmul.f32 %v889, %v897
        %v900 = vpack.c.bf16 %v898, %v898
        %v901 = vpack.c.bf16 %v899, %v899
        %v903 = vsel %vm785, %v900, 0
        %vm905 = vcmask 1043456
        %v907 = vsel %vm905, %v769, 0
        %909 = vmatprep.subr.bf16.mxu0 0
        %910 = vmatpush1.bf16.msra.mxu0 %v907
        %911 = vmatprep.subr.bf16.mxu0 0
        %912 = vmatpush1.bf16.msra.mxu0 0
        %913 = vmatprep.subr.bf16.mxu0 0
        %914 = vmatpush1.bf16.msra.mxu0 0
        %915 = vmatprep.subr.bf16.mxu0 0
        %916 = vmatpush1.bf16.msra.mxu0 0
        %917 = vmatprep.subr.bf16.mxu0 0
        %918 = vmatpush1.bf16.msra.mxu0 0
        %919 = vmatprep.subr.bf16.mxu0 0
        %920 = vmatpush1.bf16.msra.mxu0 0
        %921 = vmatprep.subr.bf16.mxu0 0
        %922 = vmatpush1.bf16.msra.mxu0 0
        %923 = vmatprep.subr.bf16.mxu0 0
        %924 = vmatpush1.bf16.msra.mxu0 0
        %925 = vmatprep.subr.bf16.mxu0 0
        %926 = vmatpush1.bf16.msra.mxu0 0
        %927 = vmatprep.subr.bf16.mxu0 0
        %928 = vmatpush1.bf16.msra.mxu0 0
        %929 = vmatprep.subr.bf16.mxu0 0
        %930 = vmatpush1.bf16.msra.mxu0 0
        %931 = vmatprep.subr.bf16.mxu0 0
        %932 = vmatpush1.bf16.msra.mxu0 0
        %933 = vmatprep.subr.bf16.mxu0 0
        %934 = vmatpush1.bf16.msra.mxu0 0
        %935 = vmatprep.subr.bf16.mxu0 0
        %936 = vmatpush1.bf16.msra.mxu0 0
        %937 = vmatprep.subr.bf16.mxu0 0
        %938 = vmatpush1.bf16.msra.mxu0 0
        %939 = vmatprep.subr.bf16.mxu0 0
        %940 = vmatpush1.bf16.msra.mxu0 0
        %941 = vmatprep.mubr.bf16.mxu0 0
        %942 = vmatmul.mubr.bf16.gmra.mrb[0].mxu0 %v903
        %v943 = vpop.f32.mrb[0].mxu0
        %v944 = vadd.f32 0.0, %v943
        %v945 = vpop.f32.mrb[0].mxu0
        %v946 = vpop.f32.mrb[0].mxu0
        %v947 = vpop.f32.mrb[0].mxu0
        %948 = vdwg.mxu0
        %v950 = vsel %vm785, %v901, 0
        %v953 = vsel %vm905, %v770, 0
        %955 = vmatprep.subr.bf16.mxu0 0
        %956 = vmatpush1.bf16.msra.mxu0 %v953
        %957 = vmatprep.subr.bf16.mxu0 0
        %958 = vmatpush1.bf16.msra.mxu0 0
        %959 = vmatprep.subr.bf16.mxu0 0
        %960 = vmatpush1.bf16.msra.mxu0 0
        %961 = vmatprep.subr.bf16.mxu0 0
        %962 = vmatpush1.bf16.msra.mxu0 0
        %963 = vmatprep.subr.bf16.mxu0 0
        %964 = vmatpush1.bf16.msra.mxu0 0
        %965 = vmatprep.subr.bf16.mxu0 0
        %966 = vmatpush1.bf16.msra.mxu0 0
        %967 = vmatprep.subr.bf16.mxu0 0
        %968 = vmatpush1.bf16.msra.mxu0 0
        %969 = vmatprep.subr.bf16.mxu0 0
        %970 = vmatpush1.bf16.msra.mxu0 0
        %971 = vmatprep.subr.bf16.mxu0 0
        %972 = vmatpush1.bf16.msra.mxu0 0
        %973 = vmatprep.subr.bf16.mxu0 0
        %974 = vmatpush1.bf16.msra.mxu0 0
        %975 = vmatprep.subr.bf16.mxu0 0
        %976 = vmatpush1.bf16.msra.mxu0 0
        %977 = vmatprep.subr.bf16.mxu0 0
        %978 = vmatpush1.bf16.msra.mxu0 0
        %979 = vmatprep.subr.bf16.mxu0 0
        %980 = vmatpush1.bf16.msra.mxu0 0
        %981 = vmatprep.subr.bf16.mxu0 0
        %982 = vmatpush1.bf16.msra.mxu0 0
        %983 = vmatprep.subr.bf16.mxu0 0
        %984 = vmatpush1.bf16.msra.mxu0 0
        %985 = vmatprep.subr.bf16.mxu0 0
        %986 = vmatpush1.bf16.msra.mxu0 0
        %987 = vmatprep.mubr.bf16.mxu0 0
        %988 = vmatmul.mubr.bf16.gmra.mrb[0].mxu0 %v950
        %v989 = vpop.f32.mrb[0].mxu0
        %v990 = vadd.f32 0.0, %v989
        %v991 = vpop.f32.mrb[0].mxu0
        %v992 = vpop.f32.mrb[0].mxu0
        %v993 = vpop.f32.mrb[0].mxu0
        %994 = vdwg.mxu0
        %v995 = vld [vmem:[#allocation2] sm:$0xff]
        %v996 = vld [vmem:[#allocation2 + $0x8] sm:$0xff]
        %v997 = vpack.c.bf16 %v990, %v944
        %v998 = vld [vmem:[%s556] sm:$0xf]
        %v1000 = vsel %vm785, %v997, 0
        %v1003 = vsel %vm905, %v998, 0
        %1005 = vmatprep.subr.bf16.mxu0 0
        %1006 = vmatpush1.bf16.msra.mxu0 %v1003
        %1007 = vmatprep.subr.bf16.mxu0 0
        %1008 = vmatpush1.bf16.msra.mxu0 0
        %1009 = vmatprep.subr.bf16.mxu0 0
        %1010 = vmatpush1.bf16.msra.mxu0 0
        %1011 = vmatprep.subr.bf16.mxu0 0
        %1012 = vmatpush1.bf16.msra.mxu0 0
        %1013 = vmatprep.subr.bf16.mxu0 0
        %1014 = vmatpush1.bf16.msra.mxu0 0
        %1015 = vmatprep.subr.bf16.mxu0 0
        %1016 = vmatpush1.bf16.msra.mxu0 0
        %1017 = vmatprep.subr.bf16.mxu0 0
        %1018 = vmatpush1.bf16.msra.mxu0 0
        %1019 = vmatprep.subr.bf16.mxu0 0
        %1020 = vmatpush1.bf16.msra.mxu0 0
        %1021 = vmatprep.subr.bf16.mxu0 0
        %1022 = vmatpush1.bf16.msra.mxu0 0
        %1023 = vmatprep.subr.bf16.mxu0 0
        %1024 = vmatpush1.bf16.msra.mxu0 0
        %1025 = vmatprep.subr.bf16.mxu0 0
        %1026 = vmatpush1.bf16.msra.mxu0 0
        %1027 = vmatprep.subr.bf16.mxu0 0
        %1028 = vmatpush1.bf16.msra.mxu0 0
        %1029 = vmatprep.subr.bf16.mxu0 0
        %1030 = vmatpush1.bf16.msra.mxu0 0
        %1031 = vmatprep.subr.bf16.mxu0 0
        %1032 = vmatpush1.bf16.msra.mxu0 0
        %1033 = vmatprep.subr.bf16.mxu0 0
        %1034 = vmatpush1.bf16.msra.mxu0 0
        %1035 = vmatprep.subr.bf16.mxu0 0
        %1036 = vmatpush1.bf16.msra.mxu0 0
        %1037 = vmatprep.mubr.bf16.mxu0 0
        %1038 = vmatmul.mubr.bf16.gmra.mrb[0].mxu0 %v1000
        %v1039 = vpop.f32.mrb[0].mxu0
        %v1040 = vadd.f32 0.0, %v1039
        %v1041 = vpop.f32.mrb[0].mxu0
        %v1042 = vpop.f32.mrb[0].mxu0
        %v1043 = vadd.f32 0.0, %v1042
        %v1044 = vpop.f32.mrb[0].mxu0
        %1045 = vdwg.mxu0
        %v1046 = vadd.f32 %v995, %v1040
        %v1047 = vadd.f32 %v996, %v1043
        %1048 = vst.msk [vmem:[#allocation2] sm:$0xff] %vm592, %v1046
        %1049 = vst.msk [vmem:[#allocation2 + $0x8] sm:$0xff] %vm592, %v1047
        %p1050 = scmp.eq.s32.totalorder %s29, 3
        // Predicated region
        $region73: #{tpu_custom_call.1} parent=67 // pred_check
          %p1051 = pneg %p1050
        $region74: #{tpu_custom_call.1} parent=67 // pred_check_branch
          %1053 = sbr.rel (%p1051) target = $region76
        $region75: #{tpu_custom_call.1} parent=67 // pred_region
          %v1054 = vld [vmem:[#allocation2] sm:$0xff]
          %v1055 = vld [vmem:[#allocation2 + $0x8] sm:$0xff]
          %v1056 = vld [vmem:[%s9] sm:$0x1]
          %v1058 = vlaneseq
          %v1059 = vshrl.u32 %v1058, 7
          %v1060 = vsub.s32 0, %v1059
          %v1061 = vrot.slane %v1056, %v1060
          %v1063 = vadd.f32 %v1054, %v1061
          %v1064 = vadd.f32 %v1055, %v1061
          %v1065 = vadd.f32 %v1063, %v566
          %v1066 = vadd.f32 %v1064, %v567
          %v1067 = vsel %vm592, %v1065, 0.0
          %1068 = vadd.xlane.f32.xlu0 %v1067
          %v1069 = vpop.xlane.xlu0 %1068
          %v1070 = vsel %vm592, %v1066, 0.0
          %1071 = vadd.xlane.f32.xlu0 %v1070
          %v1072 = vpop.xlane.xlu0 %1071
          %v1073 = vrcp.pop 32.0
          %v1074 = vmul.f32 %v1069, %v1073
          %v1075 = vmul.f32 %v1072, %v1073
          %v1076 = vsub.f32 %v1065, %v1074
          %v1077 = vsub.f32 %v1066, %v1075
          %v1078 = vmul.f32 %v1076, %v1076
          %v1079 = vmul.f32 %v1077, %v1077
          %v1080 = vsel %vm592, %v1078, 0.0
          %1081 = vadd.xlane.f32.xlu0 %v1080
          %v1082 = vpop.xlane.xlu0 %1081
          %v1083 = vsel %vm592, %v1079, 0.0
          %1084 = vadd.xlane.f32.xlu0 %v1083
          %v1085 = vpop.xlane.xlu0 %1084
          %v1086 = vmul.f32 %v1082, %v1073
          %v1087 = vmul.f32 %v1085, %v1073
          %v1088 = vadd.f32 %v1086, 1e-12
          %v1089 = vadd.f32 %v1087, 1e-12
          %v1090 = vrsqrt.pop %v1088
          %v1091 = vrsqrt.pop %v1089
          %v1092 = vmul.f32 %v1076, %v1090
          %v1093 = vmul.f32 %v1077, %v1091
          %v1094 = vld [vmem:[%s10] sm:$0x1]
          %v1096 = vlaneseq
          %v1097 = vshrl.u32 %v1096, 7
          %v1098 = vsub.s32 0, %v1097
          %v1099 = vrot.slane %v1094, %v1098
          %v1101 = vmul.f32 %v1092, %v1099
          %v1102 = vmul.f32 %v1093, %v1099
          %v1103 = vld [vmem:[%s11] sm:$0x1]
          %v1105 = vlaneseq
          %v1106 = vshrl.u32 %v1105, 7
          %v1107 = vsub.s32 0, %v1106
          %v1108 = vrot.slane %v1103, %v1107
          %v1110 = vadd.f32 %v1101, %v1108
          %v1111 = vadd.f32 %v1102, %v1108
          %1112 = vst.msk [vmem:[#allocation3] sm:$0xff] %vm592, %v1110
          %1113 = vst.msk [vmem:[#allocation3 + $0x8] sm:$0xff] %vm592, %v1111
        $region76: #{tpu_custom_call.1} parent=67 // pred_fallthru
          _
        // Predicated region
        $region77: #{tpu_custom_call.1} parent=67 // pred_check
          %p1114 = pneg %p351
        $region78: #{tpu_custom_call.1} parent=67 // pred_check_branch
          %1116 = sbr.rel (%p1114) target = $region80
        $region79: #{tpu_custom_call.1} parent=67 // pred_region
          %s1117 = smul.u32 2, %s28
          %s1119 = ssub.s32 256, 256
          %1120 = vsyncadd [#allocation4], %s1119
          %s1121 = smul.addr %s1117, 128
          %s1122 = scalar_lea.hbm %s12, %s1121
          %s1123 = sshll.u32 [#allocation3], 4
          %s1124 = int_to_ptr.vmem [resolvable:$true] %s1123
          %1129 = dma.vmem_to_hbm [thread:$0]  %s1124, 256, %s1122, [#allocation4], 128, 128, 8
        $region80: #{tpu_custom_call.1} parent=67 // pred_fallthru
          _
        // Predicated region
        $region81: #{tpu_custom_call.1} parent=67 // pred_check
          %p1130 = pneg %p351
        $region82: #{tpu_custom_call.1} parent=67 // pred_check_branch
          %1132 = sbr.rel (%p1130) target = $region84
        $region83: #{tpu_custom_call.1} parent=67 // pred_region
          %1133 = dma.done [#allocation4], 256
        $region84: #{tpu_custom_call.1} parent=67 // pred_fallthru
          _
      $region68: #{tpu_custom_call.1} parent=5 // pred_fallthru
        _
      %p1134 = scmp.le.s32.totalorder 2, %s19
      // Predicated region
      $region85: #{tpu_custom_call.1} parent=5 // pred_check
        %p1135 = pneg %p1134
      $region86: #{tpu_custom_call.1} parent=5 // pred_check_branch
        %1137 = sbr.rel (%p1135) target = $region88
      $region87: #{tpu_custom_call.1} parent=5 // pred_region
        %s1138 = ssub.s32 %s19, 2
      $region88: #{tpu_custom_call.1} parent=5 // pred_fallthru
        _
    $region6: #{tpu_custom_call.1} parent=1 // loop_footer
      %s23 = sadd.s32 1, %s19
    $region7: #{tpu_custom_call.1} parent=1 // loop_footer_branch
      %18 = sbr.rel target = $region3
    $region8: #{tpu_custom_call.1} parent=1 // loop_exit
      _
    %1139 = vsyncpa [#allocation4], 1
    %s1140 = scalar_lea.sflag [#allocation4], 1
    %1141 = vsyncpa %s1140, 1

</llo_original>
